<compile_context>
chip_gen: v6e
topology: v6e:2x2x1
jax: 0.10.0
libtpu: 0.0.40
codegen_flags: <defaults>
</compile_context>

<pallas_src>
import functools

import jax
import jax.numpy as jnp
from jax import lax
from jax.experimental import pallas as pl
from jax.experimental.pallas import tpu as pltpu

EPS = 1e-5
K = 3  # depthwise kernel size


# ----------------------------------------------------------------------------
# Fused kernel (one sample per grid step)
# ----------------------------------------------------------------------------
def _fused_kernel(xph_ref, wdw_ref, bdw_ref, wpw_ref, bpw_ref, o_ref,
                  *, s, WQ, Lo, C1, C2):
    """Fused depthwise-3x3+BN+ReLU and pointwise-1x1+BN+ReLU.

    xph_ref : (1, s*s, C1, LP) VMEM  stride-phase planes, spatial flattened
    wdw_ref : (C1, 9)   SMEM  depthwise weights (BN scale folded in)
    bdw_ref : (C1,)     SMEM  depthwise bias    (BN folded in)
    wpw_ref : (C1, C2)  SMEM  pointwise weights (BN scale folded in)
    bpw_ref : (C2,)     SMEM  pointwise bias    (BN folded in)
    o_ref   : (1, C2, Lo) VMEM output, spatial flattened to Ho*WQ lanes
    """
    # Stage 1: depthwise 3x3.  Each tap is a static lane slice (pure shift) of
    # the resident flattened phase plane -> lane rotate on the XLU, FMA on the
    # VPU.  TODO(synk): bound unroll with lax.fori_loop at real channel counts.
    ys = []
    for c1 in range(C1):
        acc = jnp.zeros((1, Lo), jnp.float32)
        for kh in range(K):
            for kw in range(K):
                ph = (kh % s) * s + (kw % s)
                shift = (kh // s) * WQ + (kw // s)
                tap = xph_ref[0, ph, c1:c1 + 1, shift:shift + Lo]
                acc = acc + wdw_ref[c1, kh * K + kw] * tap
        ys.append(jnp.maximum(acc + bdw_ref[c1], 0.0))

    # Stage 2: pointwise 1x1 as C1 scalar-broadcast FMAs per output channel
    # (right call at C1=4).  TODO(synk): at C1>=64 switch to an MXU matmul
    # with the (C1, C2-tile) weight block in VMEM instead of SMEM.
    rows = []
    for c2 in range(C2):
        acc = jnp.zeros((1, Lo), jnp.float32)
        for c1 in range(C1):
            acc = acc + wpw_ref[c1, c2] * ys[c1]
        rows.append(jnp.maximum(acc + bpw_ref[c2], 0.0))

    # One consolidated lane-dense store for the whole sample.
    o_ref[0] = jnp.concatenate(rows, axis=0)


# ----------------------------------------------------------------------------
# Wrapper: DepthSepConv2d forward (NCHW in / NCHW out, inference-mode BN)
# ----------------------------------------------------------------------------
def depth_sep_conv2d(x_nchw, params, *, stride, padding):
    N, C1, H, W = x_nchw.shape
    s1, s2 = stride
    p1, p2 = padding
    C2 = params["w_pw"].shape[1]

    # TODO(synk): the fused kernel assumes the 1x1 stage uses stride=1 and
    # padding=0 (always true in MobileNetV1).
    assert s2 == 1 and p2 == 0, "pointwise stride/padding != (1, 0) not fused"
    assert params["w_dw"].shape == (K, K, C1)

    # Fold BatchNorm (inference stats) into conv weights/bias (one-time).
    sc1 = params["bn1_gamma"] / jnp.sqrt(params["bn1_var"] + EPS)
    sh1 = params["bn1_beta"] - params["bn1_mean"] * sc1
    w_dw = (params["w_dw"] * sc1).reshape(K * K, C1).T       # (C1, 9)
    b_dw = params["b_dw"] * sc1 + sh1                        # (C1,)

    sc2 = params["bn2_gamma"] / jnp.sqrt(params["bn2_var"] + EPS)
    sh2 = params["bn2_beta"] - params["bn2_mean"] * sc2
    w_pw = params["w_pw"] * sc2[None, :]                     # (C1, C2)
    b_pw = params["b_pw"] * sc2 + sh2                        # (C2,)

    # Geometry (pointwise is stride 1 / padding 0, so it matches).
    Hp, Wp = H + 2 * p1, W + 2 * p1
    Ho, Wo = (Hp - K) // s1 + 1, (Wp - K) // s1 + 1
    max_o = (K - 1) // s1              # max tap shift inside a phase plane
    HQ, WQ = Ho + max_o, Wo + max_o    # phase-plane rows/cols actually read
    HQP = HQ + 1                       # +1 zero row: all flat tap slices in range
    LP = HQP * WQ                      # flattened phase-plane length
    Lo = Ho * WQ                       # flattened (width-padded) output length

    # Stride-phase decomposition with flattened, lane-dense spatial: phase
    # (a, b) holds x_pad[a::s, b::s]; with the accumulation domain padded to
    # width WQ every 3x3 tap becomes flat[shift:shift+Lo] (a pure lane shift).
    # Total bytes ~= 1x the padded input, one contiguous DMA per sample.
    Hpad, Wpad = max(Hp, s1 * HQ), max(Wp, s1 * WQ)
    xp = jnp.pad(x_nchw, ((0, 0), (0, 0),
                          (p1, Hpad - H - p1), (p1, Wpad - W - p1)))
    xph = xp[:, :, :s1 * HQ, :s1 * WQ].reshape(N, C1, HQ, s1, WQ, s1)
    xph = xph.transpose(0, 3, 5, 1, 2, 4)                    # (N, a, b, C1, HQ, WQ)
    xph = xph.reshape(N, s1 * s1, C1, HQ, WQ)
    xph = jnp.pad(xph, ((0, 0), (0, 0), (0, 0), (0, HQP - HQ), (0, 0)))
    xph = xph.reshape(N, s1 * s1, C1, LP)
    # TODO(synk): at real MobileNet shapes cast xph / folded weights to bf16
    # for HBM transport (v6e/v7x) and add a spatial-row grid axis.

    kernel = functools.partial(_fused_kernel, s=s1, WQ=WQ, Lo=Lo, C1=C1, C2=C2)
    smem = pl.BlockSpec(memory_space=pltpu.MemorySpace.SMEM)

    out_flat = pl.pallas_call(
        kernel,
        out_shape=jax.ShapeDtypeStruct((N, C2, Lo), jnp.float32),
        grid=(N,),
        in_specs=[
            pl.BlockSpec((1, s1 * s1, C1, LP), lambda n: (n, 0, 0, 0)),
            smem, smem, smem, smem,
        ],
        out_specs=pl.BlockSpec((1, C2, Lo), lambda n: (n, 0, 0)),
        compiler_params=pltpu.CompilerParams(
            # v7x megacore: one sample per TensorCore; no-op on v5e/v6e.
            dimension_semantics=("parallel",),
        ),
    )(xph, w_dw, b_dw, w_pw, b_pw)

    # Un-flatten and trim the WQ width-padding column(s).
    return out_flat.reshape(N, C2, Ho, WQ)[..., :Wo]


# ----------------------------------------------------------------------------
# Parameter init (mirrors DepthSepConv2d.__init__ channel arithmetic)
# ----------------------------------------------------------------------------
def init_params(key, in_channels, out_channels, alpha):
    c_in = int(in_channels * alpha)              # = groups
    c0 = int(out_channels[0] * alpha)            # depthwise output channels
    c1 = int(out_channels[1] * alpha)            # pointwise output channels
    # TODO(synk): grouped conv with channel multiplier > 1 (c0 != c_in) not
    # implemented; MobileNetV1 always uses multiplier 1.
    assert c0 == c_in, "depthwise channel multiplier must be 1"

    ks = jax.random.split(key, 14)
    u = lambda k, s: jax.random.uniform(k, s, jnp.float32, 0.5, 1.5)
    n = lambda k, s, sc=0.1: jax.random.normal(k, s, jnp.float32) * sc
    return {
        "w_dw": n(ks[0], (3, 3, c_in), 0.3),     # torch (c_in,1,3,3) as HWC
        "b_dw": n(ks[1], (c_in,)),
        "bn1_gamma": u(ks[2], (c0,)),
        "bn1_beta": n(ks[3], (c0,)),
        "bn1_mean": n(ks[4], (c0,)),
        "bn1_var": u(ks[5], (c0,)),
        "w_pw": n(ks[6], (c0, c1), 0.3),         # torch (c1,c0,1,1) as (c0,c1)
        "b_pw": n(ks[7], (c1,)),
        "bn2_gamma": u(ks[8], (c1,)),
        "bn2_beta": n(ks[9], (c1,)),
        "bn2_mean": n(ks[10], (c1,)),
        "bn2_var": u(ks[11], (c1,)),
    }


# ----------------------------------------------------------------------------
# Plain-JAX reference (same math, NCHW / lax.conv) for the correctness check.
# ----------------------------------------------------------------------------
def reference(x_nchw, P, *, stride, padding):
    C = x_nchw.shape[1]
    bcast = lambda v: v[None, :, None, None]

    w_dw = jnp.transpose(P["w_dw"], (2, 0, 1))[:, None, :, :]  # (C,1,3,3)
    y = lax.conv_general_dilated(
        x_nchw, w_dw, (stride[0], stride[0]),
        [(padding[0], padding[0])] * 2, feature_group_count=C,
        dimension_numbers=("NCHW", "OIHW", "NCHW"))
    y = y + bcast(P["b_dw"])
    y = (y - bcast(P["bn1_mean"])) / jnp.sqrt(bcast(P["bn1_var"]) + EPS) \
        * bcast(P["bn1_gamma"]) + bcast(P["bn1_beta"])
    y = jnp.maximum(y, 0.0)

    w_pw = jnp.transpose(P["w_pw"], (1, 0))[:, :, None, None]  # (C2,C1,1,1)
    z = lax.conv_general_dilated(
        y, w_pw, (stride[1], stride[1]), [(padding[1], padding[1])] * 2,
        dimension_numbers=("NCHW", "OIHW", "NCHW"))
    z = z + bcast(P["b_pw"])
    z = (z - bcast(P["bn2_mean"])) / jnp.sqrt(bcast(P["bn2_var"]) + EPS) \
        * bcast(P["bn2_gamma"]) + bcast(P["bn2_beta"])
    return jnp.maximum(z, 0.0)


if __name__ == "__main__":
    key = jax.random.PRNGKey(0)
    kx, kp = jax.random.split(key)

    # DepthSepConv2d(in_channels=8, out_channels=(8, 16), stride=(2, 1),
    #                alpha=0.5, padding=(1, 0))
    in_channels, out_channels = 8, (8, 16)
    alpha = 0.5
    stride, padding = (2, 1), (1, 0)

    c_in = int(in_channels * alpha)                            # 4
    x = jax.random.normal(kx, (2, c_in, 16, 16), jnp.float32)  # NCHW
    params = init_params(kp, in_channels, out_channels, alpha)

    out = depth_sep_conv2d(x, params, stride=stride, padding=padding)
    out = jax.block_until_ready(out)

    ref = reference(x, params, stride=stride, padding=padding)
    assert out.shape == ref.shape, (out.shape, ref.shape)
    max_err = float(jnp.max(jnp.abs(out - ref)))
    if not jnp.allclose(out, ref, atol=1e-3, rtol=1e-3):
        raise AssertionError(f"Pallas vs reference mismatch, max_err={max_err}")
    print("KERNEL_OK")
</pallas_src>

<mosaic_0001>
module attributes {stable_mosaic.version = 11 : i64} {
  func.func @_fused_kernel(%arg0: i32, %arg1: memref<1x4x4x90xf32, #tpu.memory_space<vmem>>, %arg2: memref<4x9xf32, #tpu.memory_space<smem>>, %arg3: memref<4xf32, #tpu.memory_space<smem>>, %arg4: memref<4x8xf32, #tpu.memory_space<smem>>, %arg5: memref<8xf32, #tpu.memory_space<smem>>, %arg6: memref<1x8x72xf32, #tpu.memory_space<vmem>>) attributes {dimension_semantics = [#tpu.dimension_semantics<parallel>], iteration_bounds = array<i64: 2>, scalar_prefetch = 0 : i64, scratch_operands = 0 : i64, tpu.core_type = #tpu.core_type<tc>, window_params = [{transform_indices = @transform_0, window_bounds = array<i64: 1, 4, 4, 90>}, {transform_indices = @transform_1, window_bounds = array<i64: 4, 9>}, {transform_indices = @transform_2, window_bounds = array<i64: 4>}, {transform_indices = @transform_3, window_bounds = array<i64: 4, 8>}, {transform_indices = @transform_4, window_bounds = array<i64: 8>}, {transform_indices = @transform_5, window_bounds = array<i64: 1, 8, 72>}]} {
    %cst = arith.constant 0.000000e+00 : f32
    %0 = vector.broadcast %cst : f32 to vector<1x72xf32>
    %c0 = arith.constant 0 : index
    %c0_0 = arith.constant 0 : index
    %c0_1 = arith.constant 0 : index
    %c0_2 = arith.constant 0 : index
    %1 = vector.load %arg1[%c0, %c0_0, %c0_1, %c0_2] : memref<1x4x4x90xf32, #tpu.memory_space<vmem>>, vector<1x1x1x72xf32>
    %2 = vector.shape_cast %1 : vector<1x1x1x72xf32> to vector<1x72xf32>
    %c0_3 = arith.constant 0 : index
    %c0_4 = arith.constant 0 : index
    %3 = memref.load %arg2[%c0_3, %c0_4] : memref<4x9xf32, #tpu.memory_space<smem>>
    %4 = vector.broadcast %3 : f32 to vector<1x72xf32>
    %5 = arith.mulf %4, %2 : vector<1x72xf32>
    %6 = arith.addf %0, %5 : vector<1x72xf32>
    %c0_5 = arith.constant 0 : index
    %c1 = arith.constant 1 : index
    %c0_6 = arith.constant 0 : index
    %c0_7 = arith.constant 0 : index
    %7 = vector.load %arg1[%c0_5, %c1, %c0_6, %c0_7] : memref<1x4x4x90xf32, #tpu.memory_space<vmem>>, vector<1x1x1x72xf32>
    %8 = vector.shape_cast %7 : vector<1x1x1x72xf32> to vector<1x72xf32>
    %c0_8 = arith.constant 0 : index
    %c1_9 = arith.constant 1 : index
    %9 = memref.load %arg2[%c0_8, %c1_9] : memref<4x9xf32, #tpu.memory_space<smem>>
    %10 = vector.broadcast %9 : f32 to vector<1x72xf32>
    %11 = arith.mulf %10, %8 : vector<1x72xf32>
    %12 = arith.addf %6, %11 : vector<1x72xf32>
    %c0_10 = arith.constant 0 : index
    %c0_11 = arith.constant 0 : index
    %c0_12 = arith.constant 0 : index
    %c1_13 = arith.constant 1 : index
    %13 = vector.load %arg1[%c0_10, %c0_11, %c0_12, %c1_13] : memref<1x4x4x90xf32, #tpu.memory_space<vmem>>, vector<1x1x1x72xf32>
    %14 = vector.shape_cast %13 : vector<1x1x1x72xf32> to vector<1x72xf32>
    %c0_14 = arith.constant 0 : index
    %c2 = arith.constant 2 : index
    %15 = memref.load %arg2[%c0_14, %c2] : memref<4x9xf32, #tpu.memory_space<smem>>
    %16 = vector.broadcast %15 : f32 to vector<1x72xf32>
    %17 = arith.mulf %16, %14 : vector<1x72xf32>
    %18 = arith.addf %12, %17 : vector<1x72xf32>
    %c0_15 = arith.constant 0 : index
    %c2_16 = arith.constant 2 : index
    %c0_17 = arith.constant 0 : index
    %c0_18 = arith.constant 0 : index
    %19 = vector.load %arg1[%c0_15, %c2_16, %c0_17, %c0_18] : memref<1x4x4x90xf32, #tpu.memory_space<vmem>>, vector<1x1x1x72xf32>
    %20 = vector.shape_cast %19 : vector<1x1x1x72xf32> to vector<1x72xf32>
    %c0_19 = arith.constant 0 : index
    %c3 = arith.constant 3 : index
    %21 = memref.load %arg2[%c0_19, %c3] : memref<4x9xf32, #tpu.memory_space<smem>>
    %22 = vector.broadcast %21 : f32 to vector<1x72xf32>
    %23 = arith.mulf %22, %20 : vector<1x72xf32>
    %24 = arith.addf %18, %23 : vector<1x72xf32>
    %c0_20 = arith.constant 0 : index
    %c3_21 = arith.constant 3 : index
    %c0_22 = arith.constant 0 : index
    %c0_23 = arith.constant 0 : index
    %25 = vector.load %arg1[%c0_20, %c3_21, %c0_22, %c0_23] : memref<1x4x4x90xf32, #tpu.memory_space<vmem>>, vector<1x1x1x72xf32>
    %26 = vector.shape_cast %25 : vector<1x1x1x72xf32> to vector<1x72xf32>
    %c0_24 = arith.constant 0 : index
    %c4 = arith.constant 4 : index
    %27 = memref.load %arg2[%c0_24, %c4] : memref<4x9xf32, #tpu.memory_space<smem>>
    %28 = vector.broadcast %27 : f32 to vector<1x72xf32>
    %29 = arith.mulf %28, %26 : vector<1x72xf32>
    %30 = arith.addf %24, %29 : vector<1x72xf32>
    %c0_25 = arith.constant 0 : index
    %c2_26 = arith.constant 2 : index
    %c0_27 = arith.constant 0 : index
    %c1_28 = arith.constant 1 : index
    %31 = vector.load %arg1[%c0_25, %c2_26, %c0_27, %c1_28] : memref<1x4x4x90xf32, #tpu.memory_space<vmem>>, vector<1x1x1x72xf32>
    %32 = vector.shape_cast %31 : vector<1x1x1x72xf32> to vector<1x72xf32>
    %c0_29 = arith.constant 0 : index
    %c5 = arith.constant 5 : index
    %33 = memref.load %arg2[%c0_29, %c5] : memref<4x9xf32, #tpu.memory_space<smem>>
    %34 = vector.broadcast %33 : f32 to vector<1x72xf32>
    %35 = arith.mulf %34, %32 : vector<1x72xf32>
    %36 = arith.addf %30, %35 : vector<1x72xf32>
    %c0_30 = arith.constant 0 : index
    %c0_31 = arith.constant 0 : index
    %c0_32 = arith.constant 0 : index
    %c9 = arith.constant 9 : index
    %37 = vector.load %arg1[%c0_30, %c0_31, %c0_32, %c9] : memref<1x4x4x90xf32, #tpu.memory_space<vmem>>, vector<1x1x1x72xf32>
    %38 = vector.shape_cast %37 : vector<1x1x1x72xf32> to vector<1x72xf32>
    %c0_33 = arith.constant 0 : index
    %c6 = arith.constant 6 : index
    %39 = memref.load %arg2[%c0_33, %c6] : memref<4x9xf32, #tpu.memory_space<smem>>
    %40 = vector.broadcast %39 : f32 to vector<1x72xf32>
    %41 = arith.mulf %40, %38 : vector<1x72xf32>
    %42 = arith.addf %36, %41 : vector<1x72xf32>
    %c0_34 = arith.constant 0 : index
    %c1_35 = arith.constant 1 : index
    %c0_36 = arith.constant 0 : index
    %c9_37 = arith.constant 9 : index
    %43 = vector.load %arg1[%c0_34, %c1_35, %c0_36, %c9_37] : memref<1x4x4x90xf32, #tpu.memory_space<vmem>>, vector<1x1x1x72xf32>
    %44 = vector.shape_cast %43 : vector<1x1x1x72xf32> to vector<1x72xf32>
    %c0_38 = arith.constant 0 : index
    %c7 = arith.constant 7 : index
    %45 = memref.load %arg2[%c0_38, %c7] : memref<4x9xf32, #tpu.memory_space<smem>>
    %46 = vector.broadcast %45 : f32 to vector<1x72xf32>
    %47 = arith.mulf %46, %44 : vector<1x72xf32>
    %48 = arith.addf %42, %47 : vector<1x72xf32>
    %c0_39 = arith.constant 0 : index
    %c0_40 = arith.constant 0 : index
    %c0_41 = arith.constant 0 : index
    %c10 = arith.constant 10 : index
    %49 = vector.load %arg1[%c0_39, %c0_40, %c0_41, %c10] : memref<1x4x4x90xf32, #tpu.memory_space<vmem>>, vector<1x1x1x72xf32>
    %50 = vector.shape_cast %49 : vector<1x1x1x72xf32> to vector<1x72xf32>
    %c0_42 = arith.constant 0 : index
    %c8 = arith.constant 8 : index
    %51 = memref.load %arg2[%c0_42, %c8] : memref<4x9xf32, #tpu.memory_space<smem>>
    %52 = vector.broadcast %51 : f32 to vector<1x72xf32>
    %53 = arith.mulf %52, %50 : vector<1x72xf32>
    %54 = arith.addf %48, %53 : vector<1x72xf32>
    %c0_43 = arith.constant 0 : index
    %55 = memref.load %arg3[%c0_43] : memref<4xf32, #tpu.memory_space<smem>>
    %56 = vector.broadcast %55 : f32 to vector<1x72xf32>
    %57 = arith.addf %54, %56 : vector<1x72xf32>
    %cst_44 = arith.constant 0.000000e+00 : f32
    %58 = vector.broadcast %cst_44 : f32 to vector<1x72xf32>
    %59 = arith.maximumf %57, %58 : vector<1x72xf32>
    %cst_45 = arith.constant 0.000000e+00 : f32
    %60 = vector.broadcast %cst_45 : f32 to vector<1x72xf32>
    %c0_46 = arith.constant 0 : index
    %c0_47 = arith.constant 0 : index
    %c1_48 = arith.constant 1 : index
    %c0_49 = arith.constant 0 : index
    %61 = vector.load %arg1[%c0_46, %c0_47, %c1_48, %c0_49] : memref<1x4x4x90xf32, #tpu.memory_space<vmem>>, vector<1x1x1x72xf32>
    %62 = vector.shape_cast %61 : vector<1x1x1x72xf32> to vector<1x72xf32>
    %c1_50 = arith.constant 1 : index
    %c0_51 = arith.constant 0 : index
    %63 = memref.load %arg2[%c1_50, %c0_51] : memref<4x9xf32, #tpu.memory_space<smem>>
    %64 = vector.broadcast %63 : f32 to vector<1x72xf32>
    %65 = arith.mulf %64, %62 : vector<1x72xf32>
    %66 = arith.addf %60, %65 : vector<1x72xf32>
    %c0_52 = arith.constant 0 : index
    %c1_53 = arith.constant 1 : index
    %c1_54 = arith.constant 1 : index
    %c0_55 = arith.constant 0 : index
    %67 = vector.load %arg1[%c0_52, %c1_53, %c1_54, %c0_55] : memref<1x4x4x90xf32, #tpu.memory_space<vmem>>, vector<1x1x1x72xf32>
    %68 = vector.shape_cast %67 : vector<1x1x1x72xf32> to vector<1x72xf32>
    %c1_56 = arith.constant 1 : index
    %c1_57 = arith.constant 1 : index
    %69 = memref.load %arg2[%c1_56, %c1_57] : memref<4x9xf32, #tpu.memory_space<smem>>
    %70 = vector.broadcast %69 : f32 to vector<1x72xf32>
    %71 = arith.mulf %70, %68 : vector<1x72xf32>
    %72 = arith.addf %66, %71 : vector<1x72xf32>
    %c0_58 = arith.constant 0 : index
    %c0_59 = arith.constant 0 : index
    %c1_60 = arith.constant 1 : index
    %c1_61 = arith.constant 1 : index
    %73 = vector.load %arg1[%c0_58, %c0_59, %c1_60, %c1_61] : memref<1x4x4x90xf32, #tpu.memory_space<vmem>>, vector<1x1x1x72xf32>
    %74 = vector.shape_cast %73 : vector<1x1x1x72xf32> to vector<1x72xf32>
    %c1_62 = arith.constant 1 : index
    %c2_63 = arith.constant 2 : index
    %75 = memref.load %arg2[%c1_62, %c2_63] : memref<4x9xf32, #tpu.memory_space<smem>>
    %76 = vector.broadcast %75 : f32 to vector<1x72xf32>
    %77 = arith.mulf %76, %74 : vector<1x72xf32>
    %78 = arith.addf %72, %77 : vector<1x72xf32>
    %c0_64 = arith.constant 0 : index
    %c2_65 = arith.constant 2 : index
    %c1_66 = arith.constant 1 : index
    %c0_67 = arith.constant 0 : index
    %79 = vector.load %arg1[%c0_64, %c2_65, %c1_66, %c0_67] : memref<1x4x4x90xf32, #tpu.memory_space<vmem>>, vector<1x1x1x72xf32>
    %80 = vector.shape_cast %79 : vector<1x1x1x72xf32> to vector<1x72xf32>
    %c1_68 = arith.constant 1 : index
    %c3_69 = arith.constant 3 : index
    %81 = memref.load %arg2[%c1_68, %c3_69] : memref<4x9xf32, #tpu.memory_space<smem>>
    %82 = vector.broadcast %81 : f32 to vector<1x72xf32>
    %83 = arith.mulf %82, %80 : vector<1x72xf32>
    %84 = arith.addf %78, %83 : vector<1x72xf32>
    %c0_70 = arith.constant 0 : index
    %c3_71 = arith.constant 3 : index
    %c1_72 = arith.constant 1 : index
    %c0_73 = arith.constant 0 : index
    %85 = vector.load %arg1[%c0_70, %c3_71, %c1_72, %c0_73] : memref<1x4x4x90xf32, #tpu.memory_space<vmem>>, vector<1x1x1x72xf32>
    %86 = vector.shape_cast %85 : vector<1x1x1x72xf32> to vector<1x72xf32>
    %c1_74 = arith.constant 1 : index
    %c4_75 = arith.constant 4 : index
    %87 = memref.load %arg2[%c1_74, %c4_75] : memref<4x9xf32, #tpu.memory_space<smem>>
    %88 = vector.broadcast %87 : f32 to vector<1x72xf32>
    %89 = arith.mulf %88, %86 : vector<1x72xf32>
    %90 = arith.addf %84, %89 : vector<1x72xf32>
    %c0_76 = arith.constant 0 : index
    %c2_77 = arith.constant 2 : index
    %c1_78 = arith.constant 1 : index
    %c1_79 = arith.constant 1 : index
    %91 = vector.load %arg1[%c0_76, %c2_77, %c1_78, %c1_79] : memref<1x4x4x90xf32, #tpu.memory_space<vmem>>, vector<1x1x1x72xf32>
    %92 = vector.shape_cast %91 : vector<1x1x1x72xf32> to vector<1x72xf32>
    %c1_80 = arith.constant 1 : index
    %c5_81 = arith.constant 5 : index
    %93 = memref.load %arg2[%c1_80, %c5_81] : memref<4x9xf32, #tpu.memory_space<smem>>
    %94 = vector.broadcast %93 : f32 to vector<1x72xf32>
    %95 = arith.mulf %94, %92 : vector<1x72xf32>
    %96 = arith.addf %90, %95 : vector<1x72xf32>
    %c0_82 = arith.constant 0 : index
    %c0_83 = arith.constant 0 : index
    %c1_84 = arith.constant 1 : index
    %c9_85 = arith.constant 9 : index
    %97 = vector.load %arg1[%c0_82, %c0_83, %c1_84, %c9_85] : memref<1x4x4x90xf32, #tpu.memory_space<vmem>>, vector<1x1x1x72xf32>
    %98 = vector.shape_cast %97 : vector<1x1x1x72xf32> to vector<1x72xf32>
    %c1_86 = arith.constant 1 : index
    %c6_87 = arith.constant 6 : index
    %99 = memref.load %arg2[%c1_86, %c6_87] : memref<4x9xf32, #tpu.memory_space<smem>>
    %100 = vector.broadcast %99 : f32 to vector<1x72xf32>
    %101 = arith.mulf %100, %98 : vector<1x72xf32>
    %102 = arith.addf %96, %101 : vector<1x72xf32>
    %c0_88 = arith.constant 0 : index
    %c1_89 = arith.constant 1 : index
    %c1_90 = arith.constant 1 : index
    %c9_91 = arith.constant 9 : index
    %103 = vector.load %arg1[%c0_88, %c1_89, %c1_90, %c9_91] : memref<1x4x4x90xf32, #tpu.memory_space<vmem>>, vector<1x1x1x72xf32>
    %104 = vector.shape_cast %103 : vector<1x1x1x72xf32> to vector<1x72xf32>
    %c1_92 = arith.constant 1 : index
    %c7_93 = arith.constant 7 : index
    %105 = memref.load %arg2[%c1_92, %c7_93] : memref<4x9xf32, #tpu.memory_space<smem>>
    %106 = vector.broadcast %105 : f32 to vector<1x72xf32>
    %107 = arith.mulf %106, %104 : vector<1x72xf32>
    %108 = arith.addf %102, %107 : vector<1x72xf32>
    %c0_94 = arith.constant 0 : index
    %c0_95 = arith.constant 0 : index
    %c1_96 = arith.constant 1 : index
    %c10_97 = arith.constant 10 : index
    %109 = vector.load %arg1[%c0_94, %c0_95, %c1_96, %c10_97] : memref<1x4x4x90xf32, #tpu.memory_space<vmem>>, vector<1x1x1x72xf32>
    %110 = vector.shape_cast %109 : vector<1x1x1x72xf32> to vector<1x72xf32>
    %c1_98 = arith.constant 1 : index
    %c8_99 = arith.constant 8 : index
    %111 = memref.load %arg2[%c1_98, %c8_99] : memref<4x9xf32, #tpu.memory_space<smem>>
    %112 = vector.broadcast %111 : f32 to vector<1x72xf32>
    %113 = arith.mulf %112, %110 : vector<1x72xf32>
    %114 = arith.addf %108, %113 : vector<1x72xf32>
    %c1_100 = arith.constant 1 : index
    %115 = memref.load %arg3[%c1_100] : memref<4xf32, #tpu.memory_space<smem>>
    %116 = vector.broadcast %115 : f32 to vector<1x72xf32>
    %117 = arith.addf %114, %116 : vector<1x72xf32>
    %cst_101 = arith.constant 0.000000e+00 : f32
    %118 = vector.broadcast %cst_101 : f32 to vector<1x72xf32>
    %119 = arith.maximumf %117, %118 : vector<1x72xf32>
    %cst_102 = arith.constant 0.000000e+00 : f32
    %120 = vector.broadcast %cst_102 : f32 to vector<1x72xf32>
    %c0_103 = arith.constant 0 : index
    %c0_104 = arith.constant 0 : index
    %c2_105 = arith.constant 2 : index
    %c0_106 = arith.constant 0 : index
    %121 = vector.load %arg1[%c0_103, %c0_104, %c2_105, %c0_106] : memref<1x4x4x90xf32, #tpu.memory_space<vmem>>, vector<1x1x1x72xf32>
    %122 = vector.shape_cast %121 : vector<1x1x1x72xf32> to vector<1x72xf32>
    %c2_107 = arith.constant 2 : index
    %c0_108 = arith.constant 0 : index
    %123 = memref.load %arg2[%c2_107, %c0_108] : memref<4x9xf32, #tpu.memory_space<smem>>
    %124 = vector.broadcast %123 : f32 to vector<1x72xf32>
    %125 = arith.mulf %124, %122 : vector<1x72xf32>
    %126 = arith.addf %120, %125 : vector<1x72xf32>
    %c0_109 = arith.constant 0 : index
    %c1_110 = arith.constant 1 : index
    %c2_111 = arith.constant 2 : index
    %c0_112 = arith.constant 0 : index
    %127 = vector.load %arg1[%c0_109, %c1_110, %c2_111, %c0_112] : memref<1x4x4x90xf32, #tpu.memory_space<vmem>>, vector<1x1x1x72xf32>
    %128 = vector.shape_cast %127 : vector<1x1x1x72xf32> to vector<1x72xf32>
    %c2_113 = arith.constant 2 : index
    %c1_114 = arith.constant 1 : index
    %129 = memref.load %arg2[%c2_113, %c1_114] : memref<4x9xf32, #tpu.memory_space<smem>>
    %130 = vector.broadcast %129 : f32 to vector<1x72xf32>
    %131 = arith.mulf %130, %128 : vector<1x72xf32>
    %132 = arith.addf %126, %131 : vector<1x72xf32>
    %c0_115 = arith.constant 0 : index
    %c0_116 = arith.constant 0 : index
    %c2_117 = arith.constant 2 : index
    %c1_118 = arith.constant 1 : index
    %133 = vector.load %arg1[%c0_115, %c0_116, %c2_117, %c1_118] : memref<1x4x4x90xf32, #tpu.memory_space<vmem>>, vector<1x1x1x72xf32>
    %134 = vector.shape_cast %133 : vector<1x1x1x72xf32> to vector<1x72xf32>
    %c2_119 = arith.constant 2 : index
    %c2_120 = arith.constant 2 : index
    %135 = memref.load %arg2[%c2_119, %c2_120] : memref<4x9xf32, #tpu.memory_space<smem>>
    %136 = vector.broadcast %135 : f32 to vector<1x72xf32>
    %137 = arith.mulf %136, %134 : vector<1x72xf32>
    %138 = arith.addf %132, %137 : vector<1x72xf32>
    %c0_121 = arith.constant 0 : index
    %c2_122 = arith.constant 2 : index
    %c2_123 = arith.constant 2 : index
    %c0_124 = arith.constant 0 : index
    %139 = vector.load %arg1[%c0_121, %c2_122, %c2_123, %c0_124] : memref<1x4x4x90xf32, #tpu.memory_space<vmem>>, vector<1x1x1x72xf32>
    %140 = vector.shape_cast %139 : vector<1x1x1x72xf32> to vector<1x72xf32>
    %c2_125 = arith.constant 2 : index
    %c3_126 = arith.constant 3 : index
    %141 = memref.load %arg2[%c2_125, %c3_126] : memref<4x9xf32, #tpu.memory_space<smem>>
    %142 = vector.broadcast %141 : f32 to vector<1x72xf32>
    %143 = arith.mulf %142, %140 : vector<1x72xf32>
    %144 = arith.addf %138, %143 : vector<1x72xf32>
    %c0_127 = arith.constant 0 : index
    %c3_128 = arith.constant 3 : index
    %c2_129 = arith.constant 2 : index
    %c0_130 = arith.constant 0 : index
    %145 = vector.load %arg1[%c0_127, %c3_128, %c2_129, %c0_130] : memref<1x4x4x90xf32, #tpu.memory_space<vmem>>, vector<1x1x1x72xf32>
    %146 = vector.shape_cast %145 : vector<1x1x1x72xf32> to vector<1x72xf32>
    %c2_131 = arith.constant 2 : index
    %c4_132 = arith.constant 4 : index
    %147 = memref.load %arg2[%c2_131, %c4_132] : memref<4x9xf32, #tpu.memory_space<smem>>
    %148 = vector.broadcast %147 : f32 to vector<1x72xf32>
    %149 = arith.mulf %148, %146 : vector<1x72xf32>
    %150 = arith.addf %144, %149 : vector<1x72xf32>
    %c0_133 = arith.constant 0 : index
    %c2_134 = arith.constant 2 : index
    %c2_135 = arith.constant 2 : index
    %c1_136 = arith.constant 1 : index
    %151 = vector.load %arg1[%c0_133, %c2_134, %c2_135, %c1_136] : memref<1x4x4x90xf32, #tpu.memory_space<vmem>>, vector<1x1x1x72xf32>
    %152 = vector.shape_cast %151 : vector<1x1x1x72xf32> to vector<1x72xf32>
    %c2_137 = arith.constant 2 : index
    %c5_138 = arith.constant 5 : index
    %153 = memref.load %arg2[%c2_137, %c5_138] : memref<4x9xf32, #tpu.memory_space<smem>>
    %154 = vector.broadcast %153 : f32 to vector<1x72xf32>
    %155 = arith.mulf %154, %152 : vector<1x72xf32>
    %156 = arith.addf %150, %155 : vector<1x72xf32>
    %c0_139 = arith.constant 0 : index
    %c0_140 = arith.constant 0 : index
    %c2_141 = arith.constant 2 : index
    %c9_142 = arith.constant 9 : index
    %157 = vector.load %arg1[%c0_139, %c0_140, %c2_141, %c9_142] : memref<1x4x4x90xf32, #tpu.memory_space<vmem>>, vector<1x1x1x72xf32>
    %158 = vector.shape_cast %157 : vector<1x1x1x72xf32> to vector<1x72xf32>
    %c2_143 = arith.constant 2 : index
    %c6_144 = arith.constant 6 : index
    %159 = memref.load %arg2[%c2_143, %c6_144] : memref<4x9xf32, #tpu.memory_space<smem>>
    %160 = vector.broadcast %159 : f32 to vector<1x72xf32>
    %161 = arith.mulf %160, %158 : vector<1x72xf32>
    %162 = arith.addf %156, %161 : vector<1x72xf32>
    %c0_145 = arith.constant 0 : index
    %c1_146 = arith.constant 1 : index
    %c2_147 = arith.constant 2 : index
    %c9_148 = arith.constant 9 : index
    %163 = vector.load %arg1[%c0_145, %c1_146, %c2_147, %c9_148] : memref<1x4x4x90xf32, #tpu.memory_space<vmem>>, vector<1x1x1x72xf32>
    %164 = vector.shape_cast %163 : vector<1x1x1x72xf32> to vector<1x72xf32>
    %c2_149 = arith.constant 2 : index
    %c7_150 = arith.constant 7 : index
    %165 = memref.load %arg2[%c2_149, %c7_150] : memref<4x9xf32, #tpu.memory_space<smem>>
    %166 = vector.broadcast %165 : f32 to vector<1x72xf32>
    %167 = arith.mulf %166, %164 : vector<1x72xf32>
    %168 = arith.addf %162, %167 : vector<1x72xf32>
    %c0_151 = arith.constant 0 : index
    %c0_152 = arith.constant 0 : index
    %c2_153 = arith.constant 2 : index
    %c10_154 = arith.constant 10 : index
    %169 = vector.load %arg1[%c0_151, %c0_152, %c2_153, %c10_154] : memref<1x4x4x90xf32, #tpu.memory_space<vmem>>, vector<1x1x1x72xf32>
    %170 = vector.shape_cast %169 : vector<1x1x1x72xf32> to vector<1x72xf32>
    %c2_155 = arith.constant 2 : index
    %c8_156 = arith.constant 8 : index
    %171 = memref.load %arg2[%c2_155, %c8_156] : memref<4x9xf32, #tpu.memory_space<smem>>
    %172 = vector.broadcast %171 : f32 to vector<1x72xf32>
    %173 = arith.mulf %172, %170 : vector<1x72xf32>
    %174 = arith.addf %168, %173 : vector<1x72xf32>
    %c2_157 = arith.constant 2 : index
    %175 = memref.load %arg3[%c2_157] : memref<4xf32, #tpu.memory_space<smem>>
    %176 = vector.broadcast %175 : f32 to vector<1x72xf32>
    %177 = arith.addf %174, %176 : vector<1x72xf32>
    %cst_158 = arith.constant 0.000000e+00 : f32
    %178 = vector.broadcast %cst_158 : f32 to vector<1x72xf32>
    %179 = arith.maximumf %177, %178 : vector<1x72xf32>
    %cst_159 = arith.constant 0.000000e+00 : f32
    %180 = vector.broadcast %cst_159 : f32 to vector<1x72xf32>
    %c0_160 = arith.constant 0 : index
    %c0_161 = arith.constant 0 : index
    %c3_162 = arith.constant 3 : index
    %c0_163 = arith.constant 0 : index
    %181 = vector.load %arg1[%c0_160, %c0_161, %c3_162, %c0_163] : memref<1x4x4x90xf32, #tpu.memory_space<vmem>>, vector<1x1x1x72xf32>
    %182 = vector.shape_cast %181 : vector<1x1x1x72xf32> to vector<1x72xf32>
    %c3_164 = arith.constant 3 : index
    %c0_165 = arith.constant 0 : index
    %183 = memref.load %arg2[%c3_164, %c0_165] : memref<4x9xf32, #tpu.memory_space<smem>>
    %184 = vector.broadcast %183 : f32 to vector<1x72xf32>
    %185 = arith.mulf %184, %182 : vector<1x72xf32>
    %186 = arith.addf %180, %185 : vector<1x72xf32>
    %c0_166 = arith.constant 0 : index
    %c1_167 = arith.constant 1 : index
    %c3_168 = arith.constant 3 : index
    %c0_169 = arith.constant 0 : index
    %187 = vector.load %arg1[%c0_166, %c1_167, %c3_168, %c0_169] : memref<1x4x4x90xf32, #tpu.memory_space<vmem>>, vector<1x1x1x72xf32>
    %188 = vector.shape_cast %187 : vector<1x1x1x72xf32> to vector<1x72xf32>
    %c3_170 = arith.constant 3 : index
    %c1_171 = arith.constant 1 : index
    %189 = memref.load %arg2[%c3_170, %c1_171] : memref<4x9xf32, #tpu.memory_space<smem>>
    %190 = vector.broadcast %189 : f32 to vector<1x72xf32>
    %191 = arith.mulf %190, %188 : vector<1x72xf32>
    %192 = arith.addf %186, %191 : vector<1x72xf32>
    %c0_172 = arith.constant 0 : index
    %c0_173 = arith.constant 0 : index
    %c3_174 = arith.constant 3 : index
    %c1_175 = arith.constant 1 : index
    %193 = vector.load %arg1[%c0_172, %c0_173, %c3_174, %c1_175] : memref<1x4x4x90xf32, #tpu.memory_space<vmem>>, vector<1x1x1x72xf32>
    %194 = vector.shape_cast %193 : vector<1x1x1x72xf32> to vector<1x72xf32>
    %c3_176 = arith.constant 3 : index
    %c2_177 = arith.constant 2 : index
    %195 = memref.load %arg2[%c3_176, %c2_177] : memref<4x9xf32, #tpu.memory_space<smem>>
    %196 = vector.broadcast %195 : f32 to vector<1x72xf32>
    %197 = arith.mulf %196, %194 : vector<1x72xf32>
    %198 = arith.addf %192, %197 : vector<1x72xf32>
    %c0_178 = arith.constant 0 : index
    %c2_179 = arith.constant 2 : index
    %c3_180 = arith.constant 3 : index
    %c0_181 = arith.constant 0 : index
    %199 = vector.load %arg1[%c0_178, %c2_179, %c3_180, %c0_181] : memref<1x4x4x90xf32, #tpu.memory_space<vmem>>, vector<1x1x1x72xf32>
    %200 = vector.shape_cast %199 : vector<1x1x1x72xf32> to vector<1x72xf32>
    %c3_182 = arith.constant 3 : index
    %c3_183 = arith.constant 3 : index
    %201 = memref.load %arg2[%c3_182, %c3_183] : memref<4x9xf32, #tpu.memory_space<smem>>
    %202 = vector.broadcast %201 : f32 to vector<1x72xf32>
    %203 = arith.mulf %202, %200 : vector<1x72xf32>
    %204 = arith.addf %198, %203 : vector<1x72xf32>
    %c0_184 = arith.constant 0 : index
    %c3_185 = arith.constant 3 : index
    %c3_186 = arith.constant 3 : index
    %c0_187 = arith.constant 0 : index
    %205 = vector.load %arg1[%c0_184, %c3_185, %c3_186, %c0_187] : memref<1x4x4x90xf32, #tpu.memory_space<vmem>>, vector<1x1x1x72xf32>
    %206 = vector.shape_cast %205 : vector<1x1x1x72xf32> to vector<1x72xf32>
    %c3_188 = arith.constant 3 : index
    %c4_189 = arith.constant 4 : index
    %207 = memref.load %arg2[%c3_188, %c4_189] : memref<4x9xf32, #tpu.memory_space<smem>>
    %208 = vector.broadcast %207 : f32 to vector<1x72xf32>
    %209 = arith.mulf %208, %206 : vector<1x72xf32>
    %210 = arith.addf %204, %209 : vector<1x72xf32>
    %c0_190 = arith.constant 0 : index
    %c2_191 = arith.constant 2 : index
    %c3_192 = arith.constant 3 : index
    %c1_193 = arith.constant 1 : index
    %211 = vector.load %arg1[%c0_190, %c2_191, %c3_192, %c1_193] : memref<1x4x4x90xf32, #tpu.memory_space<vmem>>, vector<1x1x1x72xf32>
    %212 = vector.shape_cast %211 : vector<1x1x1x72xf32> to vector<1x72xf32>
    %c3_194 = arith.constant 3 : index
    %c5_195 = arith.constant 5 : index
    %213 = memref.load %arg2[%c3_194, %c5_195] : memref<4x9xf32, #tpu.memory_space<smem>>
    %214 = vector.broadcast %213 : f32 to vector<1x72xf32>
    %215 = arith.mulf %214, %212 : vector<1x72xf32>
    %216 = arith.addf %210, %215 : vector<1x72xf32>
    %c0_196 = arith.constant 0 : index
    %c0_197 = arith.constant 0 : index
    %c3_198 = arith.constant 3 : index
    %c9_199 = arith.constant 9 : index
    %217 = vector.load %arg1[%c0_196, %c0_197, %c3_198, %c9_199] : memref<1x4x4x90xf32, #tpu.memory_space<vmem>>, vector<1x1x1x72xf32>
    %218 = vector.shape_cast %217 : vector<1x1x1x72xf32> to vector<1x72xf32>
    %c3_200 = arith.constant 3 : index
    %c6_201 = arith.constant 6 : index
    %219 = memref.load %arg2[%c3_200, %c6_201] : memref<4x9xf32, #tpu.memory_space<smem>>
    %220 = vector.broadcast %219 : f32 to vector<1x72xf32>
    %221 = arith.mulf %220, %218 : vector<1x72xf32>
    %222 = arith.addf %216, %221 : vector<1x72xf32>
    %c0_202 = arith.constant 0 : index
    %c1_203 = arith.constant 1 : index
    %c3_204 = arith.constant 3 : index
    %c9_205 = arith.constant 9 : index
    %223 = vector.load %arg1[%c0_202, %c1_203, %c3_204, %c9_205] : memref<1x4x4x90xf32, #tpu.memory_space<vmem>>, vector<1x1x1x72xf32>
    %224 = vector.shape_cast %223 : vector<1x1x1x72xf32> to vector<1x72xf32>
    %c3_206 = arith.constant 3 : index
    %c7_207 = arith.constant 7 : index
    %225 = memref.load %arg2[%c3_206, %c7_207] : memref<4x9xf32, #tpu.memory_space<smem>>
    %226 = vector.broadcast %225 : f32 to vector<1x72xf32>
    %227 = arith.mulf %226, %224 : vector<1x72xf32>
    %228 = arith.addf %222, %227 : vector<1x72xf32>
    %c0_208 = arith.constant 0 : index
    %c0_209 = arith.constant 0 : index
    %c3_210 = arith.constant 3 : index
    %c10_211 = arith.constant 10 : index
    %229 = vector.load %arg1[%c0_208, %c0_209, %c3_210, %c10_211] : memref<1x4x4x90xf32, #tpu.memory_space<vmem>>, vector<1x1x1x72xf32>
    %230 = vector.shape_cast %229 : vector<1x1x1x72xf32> to vector<1x72xf32>
    %c3_212 = arith.constant 3 : index
    %c8_213 = arith.constant 8 : index
    %231 = memref.load %arg2[%c3_212, %c8_213] : memref<4x9xf32, #tpu.memory_space<smem>>
    %232 = vector.broadcast %231 : f32 to vector<1x72xf32>
    %233 = arith.mulf %232, %230 : vector<1x72xf32>
    %234 = arith.addf %228, %233 : vector<1x72xf32>
    %c3_214 = arith.constant 3 : index
    %235 = memref.load %arg3[%c3_214] : memref<4xf32, #tpu.memory_space<smem>>
    %236 = vector.broadcast %235 : f32 to vector<1x72xf32>
    %237 = arith.addf %234, %236 : vector<1x72xf32>
    %cst_215 = arith.constant 0.000000e+00 : f32
    %238 = vector.broadcast %cst_215 : f32 to vector<1x72xf32>
    %239 = arith.maximumf %237, %238 : vector<1x72xf32>
    %cst_216 = arith.constant 0.000000e+00 : f32
    %240 = vector.broadcast %cst_216 : f32 to vector<1x72xf32>
    %c0_217 = arith.constant 0 : index
    %c0_218 = arith.constant 0 : index
    %241 = memref.load %arg4[%c0_217, %c0_218] : memref<4x8xf32, #tpu.memory_space<smem>>
    %242 = vector.broadcast %241 : f32 to vector<1x72xf32>
    %243 = arith.mulf %242, %59 : vector<1x72xf32>
    %244 = arith.addf %240, %243 : vector<1x72xf32>
    %c1_219 = arith.constant 1 : index
    %c0_220 = arith.constant 0 : index
    %245 = memref.load %arg4[%c1_219, %c0_220] : memref<4x8xf32, #tpu.memory_space<smem>>
    %246 = vector.broadcast %245 : f32 to vector<1x72xf32>
    %247 = arith.mulf %246, %119 : vector<1x72xf32>
    %248 = arith.addf %244, %247 : vector<1x72xf32>
    %c2_221 = arith.constant 2 : index
    %c0_222 = arith.constant 0 : index
    %249 = memref.load %arg4[%c2_221, %c0_222] : memref<4x8xf32, #tpu.memory_space<smem>>
    %250 = vector.broadcast %249 : f32 to vector<1x72xf32>
    %251 = arith.mulf %250, %179 : vector<1x72xf32>
    %252 = arith.addf %248, %251 : vector<1x72xf32>
    %c3_223 = arith.constant 3 : index
    %c0_224 = arith.constant 0 : index
    %253 = memref.load %arg4[%c3_223, %c0_224] : memref<4x8xf32, #tpu.memory_space<smem>>
    %254 = vector.broadcast %253 : f32 to vector<1x72xf32>
    %255 = arith.mulf %254, %239 : vector<1x72xf32>
    %256 = arith.addf %252, %255 : vector<1x72xf32>
    %c0_225 = arith.constant 0 : index
    %257 = memref.load %arg5[%c0_225] : memref<8xf32, #tpu.memory_space<smem>>
    %258 = vector.broadcast %257 : f32 to vector<1x72xf32>
    %259 = arith.addf %256, %258 : vector<1x72xf32>
    %cst_226 = arith.constant 0.000000e+00 : f32
    %260 = vector.broadcast %cst_226 : f32 to vector<1x72xf32>
    %261 = arith.maximumf %259, %260 : vector<1x72xf32>
    %cst_227 = arith.constant 0.000000e+00 : f32
    %262 = vector.broadcast %cst_227 : f32 to vector<1x72xf32>
    %c0_228 = arith.constant 0 : index
    %c1_229 = arith.constant 1 : index
    %263 = memref.load %arg4[%c0_228, %c1_229] : memref<4x8xf32, #tpu.memory_space<smem>>
    %264 = vector.broadcast %263 : f32 to vector<1x72xf32>
    %265 = arith.mulf %264, %59 : vector<1x72xf32>
    %266 = arith.addf %262, %265 : vector<1x72xf32>
    %c1_230 = arith.constant 1 : index
    %c1_231 = arith.constant 1 : index
    %267 = memref.load %arg4[%c1_230, %c1_231] : memref<4x8xf32, #tpu.memory_space<smem>>
    %268 = vector.broadcast %267 : f32 to vector<1x72xf32>
    %269 = arith.mulf %268, %119 : vector<1x72xf32>
    %270 = arith.addf %266, %269 : vector<1x72xf32>
    %c2_232 = arith.constant 2 : index
    %c1_233 = arith.constant 1 : index
    %271 = memref.load %arg4[%c2_232, %c1_233] : memref<4x8xf32, #tpu.memory_space<smem>>
    %272 = vector.broadcast %271 : f32 to vector<1x72xf32>
    %273 = arith.mulf %272, %179 : vector<1x72xf32>
    %274 = arith.addf %270, %273 : vector<1x72xf32>
    %c3_234 = arith.constant 3 : index
    %c1_235 = arith.constant 1 : index
    %275 = memref.load %arg4[%c3_234, %c1_235] : memref<4x8xf32, #tpu.memory_space<smem>>
    %276 = vector.broadcast %275 : f32 to vector<1x72xf32>
    %277 = arith.mulf %276, %239 : vector<1x72xf32>
    %278 = arith.addf %274, %277 : vector<1x72xf32>
    %c1_236 = arith.constant 1 : index
    %279 = memref.load %arg5[%c1_236] : memref<8xf32, #tpu.memory_space<smem>>
    %280 = vector.broadcast %279 : f32 to vector<1x72xf32>
    %281 = arith.addf %278, %280 : vector<1x72xf32>
    %cst_237 = arith.constant 0.000000e+00 : f32
    %282 = vector.broadcast %cst_237 : f32 to vector<1x72xf32>
    %283 = arith.maximumf %281, %282 : vector<1x72xf32>
    %cst_238 = arith.constant 0.000000e+00 : f32
    %284 = vector.broadcast %cst_238 : f32 to vector<1x72xf32>
    %c0_239 = arith.constant 0 : index
    %c2_240 = arith.constant 2 : index
    %285 = memref.load %arg4[%c0_239, %c2_240] : memref<4x8xf32, #tpu.memory_space<smem>>
    %286 = vector.broadcast %285 : f32 to vector<1x72xf32>
    %287 = arith.mulf %286, %59 : vector<1x72xf32>
    %288 = arith.addf %284, %287 : vector<1x72xf32>
    %c1_241 = arith.constant 1 : index
    %c2_242 = arith.constant 2 : index
    %289 = memref.load %arg4[%c1_241, %c2_242] : memref<4x8xf32, #tpu.memory_space<smem>>
    %290 = vector.broadcast %289 : f32 to vector<1x72xf32>
    %291 = arith.mulf %290, %119 : vector<1x72xf32>
    %292 = arith.addf %288, %291 : vector<1x72xf32>
    %c2_243 = arith.constant 2 : index
    %c2_244 = arith.constant 2 : index
    %293 = memref.load %arg4[%c2_243, %c2_244] : memref<4x8xf32, #tpu.memory_space<smem>>
    %294 = vector.broadcast %293 : f32 to vector<1x72xf32>
    %295 = arith.mulf %294, %179 : vector<1x72xf32>
    %296 = arith.addf %292, %295 : vector<1x72xf32>
    %c3_245 = arith.constant 3 : index
    %c2_246 = arith.constant 2 : index
    %297 = memref.load %arg4[%c3_245, %c2_246] : memref<4x8xf32, #tpu.memory_space<smem>>
    %298 = vector.broadcast %297 : f32 to vector<1x72xf32>
    %299 = arith.mulf %298, %239 : vector<1x72xf32>
    %300 = arith.addf %296, %299 : vector<1x72xf32>
    %c2_247 = arith.constant 2 : index
    %301 = memref.load %arg5[%c2_247] : memref<8xf32, #tpu.memory_space<smem>>
    %302 = vector.broadcast %301 : f32 to vector<1x72xf32>
    %303 = arith.addf %300, %302 : vector<1x72xf32>
    %cst_248 = arith.constant 0.000000e+00 : f32
    %304 = vector.broadcast %cst_248 : f32 to vector<1x72xf32>
    %305 = arith.maximumf %303, %304 : vector<1x72xf32>
    %cst_249 = arith.constant 0.000000e+00 : f32
    %306 = vector.broadcast %cst_249 : f32 to vector<1x72xf32>
    %c0_250 = arith.constant 0 : index
    %c3_251 = arith.constant 3 : index
    %307 = memref.load %arg4[%c0_250, %c3_251] : memref<4x8xf32, #tpu.memory_space<smem>>
    %308 = vector.broadcast %307 : f32 to vector<1x72xf32>
    %309 = arith.mulf %308, %59 : vector<1x72xf32>
    %310 = arith.addf %306, %309 : vector<1x72xf32>
    %c1_252 = arith.constant 1 : index
    %c3_253 = arith.constant 3 : index
    %311 = memref.load %arg4[%c1_252, %c3_253] : memref<4x8xf32, #tpu.memory_space<smem>>
    %312 = vector.broadcast %311 : f32 to vector<1x72xf32>
    %313 = arith.mulf %312, %119 : vector<1x72xf32>
    %314 = arith.addf %310, %313 : vector<1x72xf32>
    %c2_254 = arith.constant 2 : index
    %c3_255 = arith.constant 3 : index
    %315 = memref.load %arg4[%c2_254, %c3_255] : memref<4x8xf32, #tpu.memory_space<smem>>
    %316 = vector.broadcast %315 : f32 to vector<1x72xf32>
    %317 = arith.mulf %316, %179 : vector<1x72xf32>
    %318 = arith.addf %314, %317 : vector<1x72xf32>
    %c3_256 = arith.constant 3 : index
    %c3_257 = arith.constant 3 : index
    %319 = memref.load %arg4[%c3_256, %c3_257] : memref<4x8xf32, #tpu.memory_space<smem>>
    %320 = vector.broadcast %319 : f32 to vector<1x72xf32>
    %321 = arith.mulf %320, %239 : vector<1x72xf32>
    %322 = arith.addf %318, %321 : vector<1x72xf32>
    %c3_258 = arith.constant 3 : index
    %323 = memref.load %arg5[%c3_258] : memref<8xf32, #tpu.memory_space<smem>>
    %324 = vector.broadcast %323 : f32 to vector<1x72xf32>
    %325 = arith.addf %322, %324 : vector<1x72xf32>
    %cst_259 = arith.constant 0.000000e+00 : f32
    %326 = vector.broadcast %cst_259 : f32 to vector<1x72xf32>
    %327 = arith.maximumf %325, %326 : vector<1x72xf32>
    %cst_260 = arith.constant 0.000000e+00 : f32
    %328 = vector.broadcast %cst_260 : f32 to vector<1x72xf32>
    %c0_261 = arith.constant 0 : index
    %c4_262 = arith.constant 4 : index
    %329 = memref.load %arg4[%c0_261, %c4_262] : memref<4x8xf32, #tpu.memory_space<smem>>
    %330 = vector.broadcast %329 : f32 to vector<1x72xf32>
    %331 = arith.mulf %330, %59 : vector<1x72xf32>
    %332 = arith.addf %328, %331 : vector<1x72xf32>
    %c1_263 = arith.constant 1 : index
    %c4_264 = arith.constant 4 : index
    %333 = memref.load %arg4[%c1_263, %c4_264] : memref<4x8xf32, #tpu.memory_space<smem>>
    %334 = vector.broadcast %333 : f32 to vector<1x72xf32>
    %335 = arith.mulf %334, %119 : vector<1x72xf32>
    %336 = arith.addf %332, %335 : vector<1x72xf32>
    %c2_265 = arith.constant 2 : index
    %c4_266 = arith.constant 4 : index
    %337 = memref.load %arg4[%c2_265, %c4_266] : memref<4x8xf32, #tpu.memory_space<smem>>
    %338 = vector.broadcast %337 : f32 to vector<1x72xf32>
    %339 = arith.mulf %338, %179 : vector<1x72xf32>
    %340 = arith.addf %336, %339 : vector<1x72xf32>
    %c3_267 = arith.constant 3 : index
    %c4_268 = arith.constant 4 : index
    %341 = memref.load %arg4[%c3_267, %c4_268] : memref<4x8xf32, #tpu.memory_space<smem>>
    %342 = vector.broadcast %341 : f32 to vector<1x72xf32>
    %343 = arith.mulf %342, %239 : vector<1x72xf32>
    %344 = arith.addf %340, %343 : vector<1x72xf32>
    %c4_269 = arith.constant 4 : index
    %345 = memref.load %arg5[%c4_269] : memref<8xf32, #tpu.memory_space<smem>>
    %346 = vector.broadcast %345 : f32 to vector<1x72xf32>
    %347 = arith.addf %344, %346 : vector<1x72xf32>
    %cst_270 = arith.constant 0.000000e+00 : f32
    %348 = vector.broadcast %cst_270 : f32 to vector<1x72xf32>
    %349 = arith.maximumf %347, %348 : vector<1x72xf32>
    %cst_271 = arith.constant 0.000000e+00 : f32
    %350 = vector.broadcast %cst_271 : f32 to vector<1x72xf32>
    %c0_272 = arith.constant 0 : index
    %c5_273 = arith.constant 5 : index
    %351 = memref.load %arg4[%c0_272, %c5_273] : memref<4x8xf32, #tpu.memory_space<smem>>
    %352 = vector.broadcast %351 : f32 to vector<1x72xf32>
    %353 = arith.mulf %352, %59 : vector<1x72xf32>
    %354 = arith.addf %350, %353 : vector<1x72xf32>
    %c1_274 = arith.constant 1 : index
    %c5_275 = arith.constant 5 : index
    %355 = memref.load %arg4[%c1_274, %c5_275] : memref<4x8xf32, #tpu.memory_space<smem>>
    %356 = vector.broadcast %355 : f32 to vector<1x72xf32>
    %357 = arith.mulf %356, %119 : vector<1x72xf32>
    %358 = arith.addf %354, %357 : vector<1x72xf32>
    %c2_276 = arith.constant 2 : index
    %c5_277 = arith.constant 5 : index
    %359 = memref.load %arg4[%c2_276, %c5_277] : memref<4x8xf32, #tpu.memory_space<smem>>
    %360 = vector.broadcast %359 : f32 to vector<1x72xf32>
    %361 = arith.mulf %360, %179 : vector<1x72xf32>
    %362 = arith.addf %358, %361 : vector<1x72xf32>
    %c3_278 = arith.constant 3 : index
    %c5_279 = arith.constant 5 : index
    %363 = memref.load %arg4[%c3_278, %c5_279] : memref<4x8xf32, #tpu.memory_space<smem>>
    %364 = vector.broadcast %363 : f32 to vector<1x72xf32>
    %365 = arith.mulf %364, %239 : vector<1x72xf32>
    %366 = arith.addf %362, %365 : vector<1x72xf32>
    %c5_280 = arith.constant 5 : index
    %367 = memref.load %arg5[%c5_280] : memref<8xf32, #tpu.memory_space<smem>>
    %368 = vector.broadcast %367 : f32 to vector<1x72xf32>
    %369 = arith.addf %366, %368 : vector<1x72xf32>
    %cst_281 = arith.constant 0.000000e+00 : f32
    %370 = vector.broadcast %cst_281 : f32 to vector<1x72xf32>
    %371 = arith.maximumf %369, %370 : vector<1x72xf32>
    %cst_282 = arith.constant 0.000000e+00 : f32
    %372 = vector.broadcast %cst_282 : f32 to vector<1x72xf32>
    %c0_283 = arith.constant 0 : index
    %c6_284 = arith.constant 6 : index
    %373 = memref.load %arg4[%c0_283, %c6_284] : memref<4x8xf32, #tpu.memory_space<smem>>
    %374 = vector.broadcast %373 : f32 to vector<1x72xf32>
    %375 = arith.mulf %374, %59 : vector<1x72xf32>
    %376 = arith.addf %372, %375 : vector<1x72xf32>
    %c1_285 = arith.constant 1 : index
    %c6_286 = arith.constant 6 : index
    %377 = memref.load %arg4[%c1_285, %c6_286] : memref<4x8xf32, #tpu.memory_space<smem>>
    %378 = vector.broadcast %377 : f32 to vector<1x72xf32>
    %379 = arith.mulf %378, %119 : vector<1x72xf32>
    %380 = arith.addf %376, %379 : vector<1x72xf32>
    %c2_287 = arith.constant 2 : index
    %c6_288 = arith.constant 6 : index
    %381 = memref.load %arg4[%c2_287, %c6_288] : memref<4x8xf32, #tpu.memory_space<smem>>
    %382 = vector.broadcast %381 : f32 to vector<1x72xf32>
    %383 = arith.mulf %382, %179 : vector<1x72xf32>
    %384 = arith.addf %380, %383 : vector<1x72xf32>
    %c3_289 = arith.constant 3 : index
    %c6_290 = arith.constant 6 : index
    %385 = memref.load %arg4[%c3_289, %c6_290] : memref<4x8xf32, #tpu.memory_space<smem>>
    %386 = vector.broadcast %385 : f32 to vector<1x72xf32>
    %387 = arith.mulf %386, %239 : vector<1x72xf32>
    %388 = arith.addf %384, %387 : vector<1x72xf32>
    %c6_291 = arith.constant 6 : index
    %389 = memref.load %arg5[%c6_291] : memref<8xf32, #tpu.memory_space<smem>>
    %390 = vector.broadcast %389 : f32 to vector<1x72xf32>
    %391 = arith.addf %388, %390 : vector<1x72xf32>
    %cst_292 = arith.constant 0.000000e+00 : f32
    %392 = vector.broadcast %cst_292 : f32 to vector<1x72xf32>
    %393 = arith.maximumf %391, %392 : vector<1x72xf32>
    %cst_293 = arith.constant 0.000000e+00 : f32
    %394 = vector.broadcast %cst_293 : f32 to vector<1x72xf32>
    %c0_294 = arith.constant 0 : index
    %c7_295 = arith.constant 7 : index
    %395 = memref.load %arg4[%c0_294, %c7_295] : memref<4x8xf32, #tpu.memory_space<smem>>
    %396 = vector.broadcast %395 : f32 to vector<1x72xf32>
    %397 = arith.mulf %396, %59 : vector<1x72xf32>
    %398 = arith.addf %394, %397 : vector<1x72xf32>
    %c1_296 = arith.constant 1 : index
    %c7_297 = arith.constant 7 : index
    %399 = memref.load %arg4[%c1_296, %c7_297] : memref<4x8xf32, #tpu.memory_space<smem>>
    %400 = vector.broadcast %399 : f32 to vector<1x72xf32>
    %401 = arith.mulf %400, %119 : vector<1x72xf32>
    %402 = arith.addf %398, %401 : vector<1x72xf32>
    %c2_298 = arith.constant 2 : index
    %c7_299 = arith.constant 7 : index
    %403 = memref.load %arg4[%c2_298, %c7_299] : memref<4x8xf32, #tpu.memory_space<smem>>
    %404 = vector.broadcast %403 : f32 to vector<1x72xf32>
    %405 = arith.mulf %404, %179 : vector<1x72xf32>
    %406 = arith.addf %402, %405 : vector<1x72xf32>
    %c3_300 = arith.constant 3 : index
    %c7_301 = arith.constant 7 : index
    %407 = memref.load %arg4[%c3_300, %c7_301] : memref<4x8xf32, #tpu.memory_space<smem>>
    %408 = vector.broadcast %407 : f32 to vector<1x72xf32>
    %409 = arith.mulf %408, %239 : vector<1x72xf32>
    %410 = arith.addf %406, %409 : vector<1x72xf32>
    %c7_302 = arith.constant 7 : index
    %411 = memref.load %arg5[%c7_302] : memref<8xf32, #tpu.memory_space<smem>>
    %412 = vector.broadcast %411 : f32 to vector<1x72xf32>
    %413 = arith.addf %410, %412 : vector<1x72xf32>
    %cst_303 = arith.constant 0.000000e+00 : f32
    %414 = vector.broadcast %cst_303 : f32 to vector<1x72xf32>
    %415 = arith.maximumf %413, %414 : vector<1x72xf32>
    %416 = tpu.concatenate %261, %283, %305, %327, %349, %371, %393, %415 in 0 : vector<1x72xf32>, vector<1x72xf32>, vector<1x72xf32>, vector<1x72xf32>, vector<1x72xf32>, vector<1x72xf32>, vector<1x72xf32>, vector<1x72xf32> -> vector<8x72xf32>
    %c0_304 = arith.constant 0 : index
    %c0_305 = arith.constant 0 : index
    %c0_306 = arith.constant 0 : index
    %417 = vector.load %arg6[%c0_304, %c0_305, %c0_306] : memref<1x8x72xf32, #tpu.memory_space<vmem>>, vector<1x8x72xf32>
    %418 = vector.shape_cast %417 : vector<1x8x72xf32> to vector<8x72xf32>
    %419 = vector.shape_cast %416 : vector<8x72xf32> to vector<1x8x72xf32>
    tpu.vector_store %arg6[%c0_304, %c0_305, %c0_306], %419 {strides = array<i32>} : memref<1x8x72xf32, #tpu.memory_space<vmem>>, vector<1x8x72xf32>,
    return
  }
  func.func @transform_0(%arg0: i32) -> (i32, i32, i32, i32) {
    %c0_i32 = arith.constant 0 : i32
    %c0_i32_0 = arith.constant 0 : i32
    %c0_i32_1 = arith.constant 0 : i32
    %c0_i32_2 = arith.constant 0 : i32
    return %arg0, %c0_i32, %c0_i32_0, %c0_i32_1 : i32, i32, i32, i32
  }
  func.func @transform_1(%arg0: i32) -> (i32, i32) {
    %c0_i32 = arith.constant 0 : i32
    %c0_i32_0 = arith.constant 0 : i32
    %c0_i32_1 = arith.constant 0 : i32
    return %c0_i32, %c0_i32_0 : i32, i32
  }
  func.func @transform_2(%arg0: i32) -> i32 {
    %c0_i32 = arith.constant 0 : i32
    %c0_i32_0 = arith.constant 0 : i32
    return %c0_i32 : i32
  }
  func.func @transform_3(%arg0: i32) -> (i32, i32) {
    %c0_i32 = arith.constant 0 : i32
    %c0_i32_0 = arith.constant 0 : i32
    %c0_i32_1 = arith.constant 0 : i32
    return %c0_i32, %c0_i32_0 : i32, i32
  }
  func.func @transform_4(%arg0: i32) -> i32 {
    %c0_i32 = arith.constant 0 : i32
    %c0_i32_0 = arith.constant 0 : i32
    return %c0_i32 : i32
  }
  func.func @transform_5(%arg0: i32) -> (i32, i32, i32) {
    %c0_i32 = arith.constant 0 : i32
    %c0_i32_0 = arith.constant 0 : i32
    %c0_i32_1 = arith.constant 0 : i32
    return %arg0, %c0_i32, %c0_i32_0 : i32, i32, i32
  }
}

</mosaic_0001>

<llo_original>
// kernel: tpu_custom_call.1
$region0: #{tpu_custom_call.1}
  #allocation0 [shape = 'u32[]', space=smem, size = 0x4, offset = 0x4, fixed_abs, tag = 'smem constant byte address 0x4 - core index']
  #allocation1 [shape = 'u32[144,128]{1,0:T(1,128)}', space=vmem, size = 0x12000, scoped, tag = 'internal scratch']
  %s0 = inlined_call_operand.hbm [shape: f32[2,4,4,90], index: 0, kind: input, shape index: {}]
  %s1 = inlined_call_operand.hbm [shape: f32[4,9], index: 1, kind: input, shape index: {}]
  %s2 = inlined_call_operand.vmem [shape: f32[4], index: 2, kind: input, shape index: {}]
  %s3 = inlined_call_operand.vmem [shape: f32[4,8], index: 3, kind: input, shape index: {}]
  %s4 = inlined_call_operand.vmem [shape: f32[8], index: 4, kind: input, shape index: {}]
  %s5 = inlined_call_operand.hbm [shape: f32[2,8,72], index: 5, kind: output, shape index: {}]
  %s6 = sld [smem:[#allocation0]]
  $region73: #{tpu_custom_call.1} parent=0
    _
  %s8 = ssub.s32 1, %s6
  %s9 = scalar_select 0, %s8, %s6
  $region1: #{tpu_custom_call.1} parent=0
    #allocation2 [shape = 'u8[16384]{0}', space=vmem, size = 0x4000, scoped, tag = 'input window, operand 0']
    #allocation3 [shape = 's32[2]{0}', space=sflag, size = 0x8, scoped, tag = 'scoped memory for tpu_custom_call.1']
    #allocation4 [shape = 's32[2]{0}', space=sflag, size = 0x8, scoped, tag = 'scoped memory for tpu_custom_call.1']
    #allocation5 [shape = 's32[2]{0}', space=sflag, size = 0x8, scoped, tag = 'scoped memory for tpu_custom_call.1']
    #allocation6 [shape = 's32[2]{0}', space=sflag, size = 0x8, scoped, tag = 'scoped memory for tpu_custom_call.1']
    #allocation7 [shape = 'u8[2048]{0}', space=smem, size = 0x800, scoped, tag = 'input window, operand 1, single buffered']
    #allocation8 [shape = 'u8[512]{0}', space=smem, size = 0x200, scoped, tag = 'input window, operand 2, single buffered']
    #allocation9 [shape = 'u8[2048]{0}', space=smem, size = 0x800, scoped, tag = 'input window, operand 3, single buffered']
    #allocation10 [shape = 's32[1]{0}', space=sflag, size = 0x4, scoped, tag = 'scoped memory for tpu_custom_call.1']
    #allocation11 [shape = 'u8[512]{0}', space=smem, size = 0x200, scoped, tag = 'input window, operand 4, single buffered']
    #allocation12 [shape = 'u8[8192]{0}', space=vmem, size = 0x2000, scoped, tag = 'output window, operand 0']
    %10 = vsyncpa [#allocation3], 0
    %s11 = scalar_lea.sflag [#allocation3], 1
    %12 = vsyncpa %s11, 0
    %13 = vsyncpa [#allocation5], 0
    %14 = vsyncpa [#allocation6], 0
    %15 = vsyncpa [#allocation10], 0
    %16 = vsyncpa [#allocation4], 0
    %s17 = scalar_lea.sflag [#allocation4], 1
    %18 = vsyncpa %s17, 0
    loop: start=0, step=1, limit=4
    $region2: #{tpu_custom_call.1} parent=1 // loop_pre_header
      _
    $region3: #{tpu_custom_call.1} parent=1 // loop_header
      %s20 = sphi 0, %s24
      %p21 = scmp.ge.s32.totalorder %s20, 4
      %s30 = sphi 0, %s32
      %s33 = sphi 0, %s30
      %s34 = sphi 0, %s33
      %s50 = sphi 0, %s34
      %s54 = sphi 0, %s54
      %s56 = sphi 0, %s54
      %s57 = sphi 0, %s56
      %s71 = sphi 0, %s57
      %s75 = sphi 0, %s75
      %s77 = sphi 0, %s75
      %s78 = sphi 0, %s77
      %s92 = sphi 0, %s78
      %s96 = sphi 0, %s96
      %s98 = sphi 0, %s96
      %s99 = sphi 0, %s98
      %s113 = sphi 0, %s99
      %s117 = sphi 0, %s117
      %s119 = sphi 0, %s117
      %s120 = sphi 0, %s119
      %s134 = sphi 0, %s120
      %s140 = sphi 0, %s142
      %s143 = sphi 0, %s140
      %s144 = sphi 0, %s143
      %s160 = sphi 0, %s144
    $region4: #{tpu_custom_call.1} parent=1 // loop_header_branch
      %23 = sbr.rel (%p21) target = $region8
    $region5: #{tpu_custom_call.1} parent=1 // loop_body
      %s25 = ssub.s32 %s20, 1
      %s26 = ssub.s32 %s20, 2
      %s27 = sadd.s32 %s20, 1
      %s28 = ssub.s32 %s20, %s27
      %p29 = scmp.eq.s32.totalorder %s28, 0
      %s31 = sadd.s32 %s30, 1
      %s32 = scalar_select %p29, %s30, %s31
      %p35 = pneg %p29
      %p36 = scmp.eq.s32.totalorder %s20, 1
      %p37 = por %p35, %p36
      %p38 = scmp.ne.s32.totalorder %s30, %s33
      %p39 = scmp.eq.s32.totalorder %s20, 0
      %p40 = por %p38, %p39
      %p41 = scmp.ne.s32.totalorder %s30, %s33
      %p42 = scmp.eq.s32.totalorder %s25, 1
      %p43 = por %p41, %p42
      %p44 = scmp.ne.s32.totalorder %s33, %s34
      %p45 = scmp.eq.s32.totalorder %s25, 0
      %p46 = por %p44, %p45
      %p47 = scmp.ne.s32.totalorder %s33, %s34
      %p48 = scmp.eq.s32.totalorder %s26, 1
      %p49 = por %p47, %p48
      %p51 = scmp.ne.s32.totalorder %s34, %s50
      %p52 = scmp.eq.s32.totalorder %s26, 0
      %p53 = por %p51, %p52
      %s55 = sadd.s32 %s54, 1
      %p58 = scmp.eq.s32.totalorder %s20, 1
      %p59 = scmp.ne.s32.totalorder %s54, %s56
      %p60 = scmp.eq.s32.totalorder %s20, 0
      %p61 = por %p59, %p60
      %p62 = scmp.ne.s32.totalorder %s54, %s56
      %p63 = scmp.eq.s32.totalorder %s25, 1
      %p64 = por %p62, %p63
      %p65 = scmp.ne.s32.totalorder %s56, %s57
      %p66 = scmp.eq.s32.totalorder %s25, 0
      %p67 = por %p65, %p66
      %p68 = scmp.ne.s32.totalorder %s56, %s57
      %p69 = scmp.eq.s32.totalorder %s26, 1
      %p70 = por %p68, %p69
      %p72 = scmp.ne.s32.totalorder %s57, %s71
      %p73 = scmp.eq.s32.totalorder %s26, 0
      %p74 = por %p72, %p73
      %s76 = sadd.s32 %s75, 1
      %p79 = scmp.eq.s32.totalorder %s20, 1
      %p80 = scmp.ne.s32.totalorder %s75, %s77
      %p81 = scmp.eq.s32.totalorder %s20, 0
      %p82 = por %p80, %p81
      %p83 = scmp.ne.s32.totalorder %s75, %s77
      %p84 = scmp.eq.s32.totalorder %s25, 1
      %p85 = por %p83, %p84
      %p86 = scmp.ne.s32.totalorder %s77, %s78
      %p87 = scmp.eq.s32.totalorder %s25, 0
      %p88 = por %p86, %p87
      %p89 = scmp.ne.s32.totalorder %s77, %s78
      %p90 = scmp.eq.s32.totalorder %s26, 1
      %p91 = por %p89, %p90
      %p93 = scmp.ne.s32.totalorder %s78, %s92
      %p94 = scmp.eq.s32.totalorder %s26, 0
      %p95 = por %p93, %p94
      %s97 = sadd.s32 %s96, 1
      %p100 = scmp.eq.s32.totalorder %s20, 1
      %p101 = scmp.ne.s32.totalorder %s96, %s98
      %p102 = scmp.eq.s32.totalorder %s20, 0
      %p103 = por %p101, %p102
      %p104 = scmp.ne.s32.totalorder %s96, %s98
      %p105 = scmp.eq.s32.totalorder %s25, 1
      %p106 = por %p104, %p105
      %p107 = scmp.ne.s32.totalorder %s98, %s99
      %p108 = scmp.eq.s32.totalorder %s25, 0
      %p109 = por %p107, %p108
      %p110 = scmp.ne.s32.totalorder %s98, %s99
      %p111 = scmp.eq.s32.totalorder %s26, 1
      %p112 = por %p110, %p111
      %p114 = scmp.ne.s32.totalorder %s99, %s113
      %p115 = scmp.eq.s32.totalorder %s26, 0
      %p116 = por %p114, %p115
      %s118 = sadd.s32 %s117, 1
      %p121 = scmp.eq.s32.totalorder %s20, 1
      %p122 = scmp.ne.s32.totalorder %s117, %s119
      %p123 = scmp.eq.s32.totalorder %s20, 0
      %p124 = por %p122, %p123
      %p125 = scmp.ne.s32.totalorder %s117, %s119
      %p126 = scmp.eq.s32.totalorder %s25, 1
      %p127 = por %p125, %p126
      %p128 = scmp.ne.s32.totalorder %s119, %s120
      %p129 = scmp.eq.s32.totalorder %s25, 0
      %p130 = por %p128, %p129
      %p131 = scmp.ne.s32.totalorder %s119, %s120
      %p132 = scmp.eq.s32.totalorder %s26, 1
      %p133 = por %p131, %p132
      %p135 = scmp.ne.s32.totalorder %s120, %s134
      %p136 = scmp.eq.s32.totalorder %s26, 0
      %p137 = por %p135, %p136
      %s138 = ssub.s32 %s20, %s27
      %p139 = scmp.eq.s32.totalorder %s138, 0
      %s141 = sadd.s32 %s140, 1
      %s142 = scalar_select %p139, %s140, %s141
      %p145 = pneg %p139
      %p146 = scmp.eq.s32.totalorder %s20, 1
      %p147 = por %p145, %p146
      %p148 = scmp.ne.s32.totalorder %s140, %s143
      %p149 = scmp.eq.s32.totalorder %s20, 0
      %p150 = por %p148, %p149
      %p151 = scmp.ne.s32.totalorder %s140, %s143
      %p152 = scmp.eq.s32.totalorder %s25, 1
      %p153 = por %p151, %p152
      %p154 = scmp.ne.s32.totalorder %s143, %s144
      %p155 = scmp.eq.s32.totalorder %s25, 0
      %p156 = por %p154, %p155
      %p157 = scmp.ne.s32.totalorder %s143, %s144
      %p158 = scmp.eq.s32.totalorder %s26, 1
      %p159 = por %p157, %p158
      %p161 = scmp.ne.s32.totalorder %s144, %s160
      %p162 = scmp.eq.s32.totalorder %s26, 0
      %p163 = por %p161, %p162
      %p164 = scmp.le.s32.totalorder 1, %s20
      %p165 = scmp.lt.s32.totalorder %s20, 3
      %p166 = pnand %p164, %p165
      %p167 = pneg %p166
      // Predicated region
      $region9: #{tpu_custom_call.1} parent=5 // pred_check
        _
      $region10: #{tpu_custom_call.1} parent=5 // pred_check_branch
        %169 = sbr.rel (%p166) target = $region12
      $region11: #{tpu_custom_call.1} parent=5 // pred_region
        %s170 = ssub.s32 %s20, 1
        // Predicated region
        $region13: #{tpu_custom_call.1} parent=11 // pred_check
          %p171 = pneg %p67
        $region14: #{tpu_custom_call.1} parent=11 // pred_check_branch
          %173 = sbr.rel (%p171) target = $region16
        $region15: #{tpu_custom_call.1} parent=11 // pred_region
          %s175 = ssub.s32 64, 64
          %176 = vsyncadd [#allocation5], %s175
          %179 = dma.hbm_to_smem %s1, 64, [#allocation7], [#allocation5]
        $region16: #{tpu_custom_call.1} parent=11 // pred_fallthru
          _
        // Predicated region
        $region17: #{tpu_custom_call.1} parent=11 // pred_check
          %p180 = pneg %p88
        $region18: #{tpu_custom_call.1} parent=11 // pred_check_branch
          %182 = sbr.rel (%p180) target = $region20
        $region19: #{tpu_custom_call.1} parent=11 // pred_region
          %s184 = ssub.s32 16, 16
          %185 = vsyncadd [#allocation6], %s184
          %s187 = sshll.u32 %s2, 4
          %s188 = int_to_ptr.vmem [resolvable:$true] %s187
          %190 = dma.vmem_to_smem %s188, 16, [#allocation8], [#allocation6]
        $region20: #{tpu_custom_call.1} parent=11 // pred_fallthru
          _
        // Predicated region
        $region21: #{tpu_custom_call.1} parent=11 // pred_check
          %p191 = pneg %p109
        $region22: #{tpu_custom_call.1} parent=11 // pred_check_branch
          %193 = sbr.rel (%p191) target = $region24
        $region23: #{tpu_custom_call.1} parent=11 // pred_region
          %s195 = ssub.s32 64, 64
          %196 = vsyncadd [#allocation10], %s195
          %s198 = sshll.u32 %s3, 4
          %s199 = int_to_ptr.vmem [resolvable:$true] %s198
          %201 = dma.vmem_to_smem %s199, 64, [#allocation9], [#allocation10]
        $region24: #{tpu_custom_call.1} parent=11 // pred_fallthru
          _
        // Predicated region
        $region25: #{tpu_custom_call.1} parent=11 // pred_check
          %p202 = pneg %p130
        $region26: #{tpu_custom_call.1} parent=11 // pred_check_branch
          %204 = sbr.rel (%p202) target = $region28
        $region27: #{tpu_custom_call.1} parent=11 // pred_region
          %s206 = ssub.s32 16, 16
          %207 = vsyncadd [#allocation10], %s206
          %s209 = sshll.u32 %s4, 4
          %s210 = int_to_ptr.vmem [resolvable:$true] %s209
          %212 = dma.vmem_to_smem %s210, 16, [#allocation11], [#allocation10]
        $region28: #{tpu_custom_call.1} parent=11 // pred_fallthru
          _
      $region12: #{tpu_custom_call.1} parent=5 // pred_fallthru
        _
      %p213 = scmp.lt.s32.totalorder %s20, 2
      // Predicated region
      $region29: #{tpu_custom_call.1} parent=5 // pred_check
        %p214 = pneg %p213
      $region30: #{tpu_custom_call.1} parent=5 // pred_check_branch
        %216 = sbr.rel (%p214) target = $region32
      $region31: #{tpu_custom_call.1} parent=5 // pred_region
        // Predicated region
        $region33: #{tpu_custom_call.1} parent=31 // pred_check
          %p217 = pneg %p40
        $region34: #{tpu_custom_call.1} parent=31 // pred_check_branch
          %219 = sbr.rel (%p217) target = $region36
        $region35: #{tpu_custom_call.1} parent=31 // pred_region
          %s220 = sand.u32 %s30, 1
          %s221 = scalar_lea.sflag [#allocation3], %s220
          %s222 = sand.u32 %s30, 1
          %s223 = smul.addr %s222, 16
          %s224 = scalar_lea.vmem [#allocation2], %s223
          %s226 = ssub.s32 256, 256
          %227 = vsyncadd %s221, %s226
          %s228 = smul.addr %s20, 4
          %s229 = smul.addr %s228, 64
          %s230 = scalar_lea.hbm %s0, %s229
          %s231 = sshll.u32 %s224, 4
          %s232 = int_to_ptr.vmem [resolvable:$true] %s231
          %237 = dma.hbm_to_vmem [thread:$0]  %s230, 256, %s232, %s221, 64, 64, 4
        $region36: #{tpu_custom_call.1} parent=31 // pred_fallthru
          _
      $region32: #{tpu_custom_call.1} parent=5 // pred_fallthru
        _
      %p238 = scmp.le.s32.totalorder 1, %s20
      %p239 = scmp.lt.s32.totalorder %s20, 3
      %p240 = pnand %p238, %p239
      %p241 = pneg %p240
      // Predicated region
      $region37: #{tpu_custom_call.1} parent=5 // pred_check
        _
      $region38: #{tpu_custom_call.1} parent=5 // pred_check_branch
        %243 = sbr.rel (%p240) target = $region40
      $region39: #{tpu_custom_call.1} parent=5 // pred_region
        %s244 = ssub.s32 %s20, 1
        %s245 = sand.u32 %s33, 1
        %s246 = scalar_lea.sflag [#allocation3], %s245
        %s247 = sand.u32 %s33, 1
        %s248 = smul.addr %s247, 16
        %s249 = scalar_lea.vmem [#allocation2], %s248
        // Predicated region
        $region41: #{tpu_custom_call.1} parent=39 // pred_check
          %p250 = pneg %p46
        $region42: #{tpu_custom_call.1} parent=39 // pred_check_branch
          %252 = sbr.rel (%p250) target = $region44
        $region43: #{tpu_custom_call.1} parent=39 // pred_region
          %253 = dma.done %s246, 256
        $region44: #{tpu_custom_call.1} parent=39 // pred_fallthru
          _
        // Predicated region
        $region45: #{tpu_custom_call.1} parent=39 // pred_check
          %p254 = pneg %p67
        $region46: #{tpu_custom_call.1} parent=39 // pred_check_branch
          %256 = sbr.rel (%p254) target = $region48
        $region47: #{tpu_custom_call.1} parent=39 // pred_region
          %257 = dma.done [#allocation5], 64
        $region48: #{tpu_custom_call.1} parent=39 // pred_fallthru
          _
        // Predicated region
        $region49: #{tpu_custom_call.1} parent=39 // pred_check
          %p258 = pneg %p88
        $region50: #{tpu_custom_call.1} parent=39 // pred_check_branch
          %260 = sbr.rel (%p258) target = $region52
        $region51: #{tpu_custom_call.1} parent=39 // pred_region
          %261 = dma.done [#allocation6], 16
        $region52: #{tpu_custom_call.1} parent=39 // pred_fallthru
          _
        // Predicated region
        $region53: #{tpu_custom_call.1} parent=39 // pred_check
          %p262 = pneg %p109
        $region54: #{tpu_custom_call.1} parent=39 // pred_check_branch
          %264 = sbr.rel (%p262) target = $region56
        $region55: #{tpu_custom_call.1} parent=39 // pred_region
          %265 = dma.done [#allocation10], 64
        $region56: #{tpu_custom_call.1} parent=39 // pred_fallthru
          _
        // Predicated region
        $region57: #{tpu_custom_call.1} parent=39 // pred_check
          %p266 = pneg %p130
        $region58: #{tpu_custom_call.1} parent=39 // pred_check_branch
          %268 = sbr.rel (%p266) target = $region60
        $region59: #{tpu_custom_call.1} parent=39 // pred_region
          %269 = dma.done [#allocation10], 16
        $region60: #{tpu_custom_call.1} parent=39 // pred_fallthru
          _
        %270 = sfence
        %s271 = sand.u32 %s33, 1
        %s272 = scalar_lea.sflag [#allocation3], %s271
        %s273 = sand.u32 %s33, 1
        %s274 = smul.addr %s273, 16
        %s275 = scalar_lea.vmem [#allocation2], %s274
        %p276 = pneg %p46
        %p277 = pneg %p43
        %p278 = pneg %p67
        %p279 = pneg %p64
        %p280 = pneg %p88
        %p281 = pneg %p85
        %p282 = pneg %p109
        %p283 = pneg %p106
        %p284 = pneg %p130
        %p285 = pneg %p127
        %p286 = pneg %p156
        %p287 = pneg %p153
        %s288 = sand.u32 %s143, 1
        %s289 = scalar_lea.sflag [#allocation4], %s288
        %s290 = sand.u32 %s143, 1
        %s291 = smul.addr %s290, 8
        %s292 = scalar_lea.vmem [#allocation12], %s291
        %v293 = vld [vmem:[%s249] sm:$0x1]
        %s294 = sld [smem:[#allocation7]]
        %v295 = vstv %s294
        %v296 = vmul.f32 %v295, %v293
        %v297 = vadd.f32 %v296, 0.0
        %s298 = scalar_lea.vmem %s249, 4 [#allocation2]
        %v299 = vld [vmem:[%s298] sm:$0x1]
        %s300 = sld [smem:[#allocation7 + $0x1]]
        %v301 = vstv %s300
        %v302 = vmul.f32 %v301, %v299
        %v303 = vadd.f32 %v297, %v302
        %s304 = sld [smem:[#allocation7 + $0x2]]
        %v305 = vstv %s304
        %v306 = vmul.f32 %v305, %v293
        %308 = vrot.lane.b32.xlu0 %v306, 127
        %v309 = vpop.permute.xlu0 %308
        %v311 = vadd.f32 %v303, %v309
        %s312 = scalar_lea.vmem %s249, 8 [#allocation2]
        %v313 = vld [vmem:[%s312] sm:$0x1]
        %s314 = sld [smem:[#allocation7 + $0x3]]
        %v315 = vstv %s314
        %v316 = vmul.f32 %v315, %v313
        %v317 = vadd.f32 %v311, %v316
        %s318 = scalar_lea.vmem %s249, 12 [#allocation2]
        %v319 = vld [vmem:[%s318] sm:$0x1]
        %s320 = sld [smem:[#allocation7 + $0x4]]
        %v321 = vstv %s320
        %v322 = vmul.f32 %v321, %v319
        %v323 = vadd.f32 %v317, %v322
        %s324 = sld [smem:[#allocation7 + $0x5]]
        %v325 = vstv %s324
        %v326 = vmul.f32 %v325, %v313
        %328 = vrot.lane.b32.xlu0 %v326, 127
        %v329 = vpop.permute.xlu0 %328
        %v331 = vadd.f32 %v323, %v329
        %s332 = sld [smem:[#allocation7 + $0x6]]
        %v333 = vstv %s332
        %v334 = vmul.f32 %v333, %v293
        %336 = vrot.lane.b32.xlu0 %v334, 119
        %v337 = vpop.permute.xlu0 %336
        %v339 = vadd.f32 %v331, %v337
        %s340 = sld [smem:[#allocation7 + $0x7]]
        %v341 = vstv %s340
        %v342 = vmul.f32 %v341, %v299
        %344 = vrot.lane.b32.xlu0 %v342, 119
        %v345 = vpop.permute.xlu0 %344
        %v347 = vadd.f32 %v339, %v345
        %s348 = sld [smem:[#allocation7 + $0x8]]
        %v349 = vstv %s348
        %v350 = vmul.f32 %v349, %v293
        %352 = vrot.lane.b32.xlu0 %v350, 118
        %v353 = vpop.permute.xlu0 %352
        %v355 = vadd.f32 %v347, %v353
        %s356 = sld [smem:[#allocation8]]
        %v357 = vstv %s356
        %v358 = vadd.f32 %v355, %v357
        %v359 = vmax.f32 %v358, 0.0
        %v360 = vld [vmem:[%s249 + $0x1] sm:$0x1]
        %s361 = sld [smem:[#allocation7 + $0x80]]
        %v362 = vstv %s361
        %v363 = vmul.f32 %v362, %v360
        %v364 = vadd.f32 %v363, 0.0
        %v365 = vld [vmem:[%s298 + $0x1] sm:$0x1]
        %s366 = sld [smem:[#allocation7 + $0x81]]
        %v367 = vstv %s366
        %v368 = vmul.f32 %v367, %v365
        %v369 = vadd.f32 %v364, %v368
        %s370 = sld [smem:[#allocation7 + $0x82]]
        %v371 = vstv %s370
        %v372 = vmul.f32 %v371, %v360
        %374 = vrot.lane.b32.xlu0 %v372, 127
        %v375 = vpop.permute.xlu0 %374
        %v377 = vadd.f32 %v369, %v375
        %v378 = vld [vmem:[%s312 + $0x1] sm:$0x1]
        %s379 = sld [smem:[#allocation7 + $0x83]]
        %v380 = vstv %s379
        %v381 = vmul.f32 %v380, %v378
        %v382 = vadd.f32 %v377, %v381
        %v383 = vld [vmem:[%s318 + $0x1] sm:$0x1]
        %s384 = sld [smem:[#allocation7 + $0x84]]
        %v385 = vstv %s384
        %v386 = vmul.f32 %v385, %v383
        %v387 = vadd.f32 %v382, %v386
        %s388 = sld [smem:[#allocation7 + $0x85]]
        %v389 = vstv %s388
        %v390 = vmul.f32 %v389, %v378
        %392 = vrot.lane.b32.xlu0 %v390, 127
        %v393 = vpop.permute.xlu0 %392
        %v395 = vadd.f32 %v387, %v393
        %s396 = sld [smem:[#allocation7 + $0x86]]
        %v397 = vstv %s396
        %v398 = vmul.f32 %v397, %v360
        %400 = vrot.lane.b32.xlu0 %v398, 119
        %v401 = vpop.permute.xlu0 %400
        %v403 = vadd.f32 %v395, %v401
        %s404 = sld [smem:[#allocation7 + $0x87]]
        %v405 = vstv %s404
        %v406 = vmul.f32 %v405, %v365
        %408 = vrot.lane.b32.xlu0 %v406, 119
        %v409 = vpop.permute.xlu0 %408
        %v411 = vadd.f32 %v403, %v409
        %s412 = sld [smem:[#allocation7 + $0x88]]
        %v413 = vstv %s412
        %v414 = vmul.f32 %v413, %v360
        %416 = vrot.lane.b32.xlu0 %v414, 118
        %v417 = vpop.permute.xlu0 %416
        %v419 = vadd.f32 %v411, %v417
        %s420 = sld [smem:[#allocation8 + $0x1]]
        %v421 = vstv %s420
        %v422 = vadd.f32 %v419, %v421
        %v423 = vmax.f32 %v422, 0.0
        %v424 = vld [vmem:[%s249 + $0x2] sm:$0x1]
        %s425 = sld [smem:[#allocation7 + $0x100]]
        %v426 = vstv %s425
        %v427 = vmul.f32 %v426, %v424
        %v428 = vadd.f32 %v427, 0.0
        %v429 = vld [vmem:[%s298 + $0x2] sm:$0x1]
        %s430 = sld [smem:[#allocation7 + $0x101]]
        %v431 = vstv %s430
        %v432 = vmul.f32 %v431, %v429
        %v433 = vadd.f32 %v428, %v432
        %s434 = sld [smem:[#allocation7 + $0x102]]
        %v435 = vstv %s434
        %v436 = vmul.f32 %v435, %v424
        %438 = vrot.lane.b32.xlu0 %v436, 127
        %v439 = vpop.permute.xlu0 %438
        %v441 = vadd.f32 %v433, %v439
        %v442 = vld [vmem:[%s312 + $0x2] sm:$0x1]
        %s443 = sld [smem:[#allocation7 + $0x103]]
        %v444 = vstv %s443
        %v445 = vmul.f32 %v444, %v442
        %v446 = vadd.f32 %v441, %v445
        %v447 = vld [vmem:[%s318 + $0x2] sm:$0x1]
        %s448 = sld [smem:[#allocation7 + $0x104]]
        %v449 = vstv %s448
        %v450 = vmul.f32 %v449, %v447
        %v451 = vadd.f32 %v446, %v450
        %s452 = sld [smem:[#allocation7 + $0x105]]
        %v453 = vstv %s452
        %v454 = vmul.f32 %v453, %v442
        %456 = vrot.lane.b32.xlu0 %v454, 127
        %v457 = vpop.permute.xlu0 %456
        %v459 = vadd.f32 %v451, %v457
        %s460 = sld [smem:[#allocation7 + $0x106]]
        %v461 = vstv %s460
        %v462 = vmul.f32 %v461, %v424
        %464 = vrot.lane.b32.xlu0 %v462, 119
        %v465 = vpop.permute.xlu0 %464
        %v467 = vadd.f32 %v459, %v465
        %s468 = sld [smem:[#allocation7 + $0x107]]
        %v469 = vstv %s468
        %v470 = vmul.f32 %v469, %v429
        %472 = vrot.lane.b32.xlu0 %v470, 119
        %v473 = vpop.permute.xlu0 %472
        %v475 = vadd.f32 %v467, %v473
        %s476 = sld [smem:[#allocation7 + $0x108]]
        %v477 = vstv %s476
        %v478 = vmul.f32 %v477, %v424
        %480 = vrot.lane.b32.xlu0 %v478, 118
        %v481 = vpop.permute.xlu0 %480
        %v483 = vadd.f32 %v475, %v481
        %s484 = sld [smem:[#allocation8 + $0x2]]
        %v485 = vstv %s484
        %v486 = vadd.f32 %v483, %v485
        %v487 = vmax.f32 %v486, 0.0
        %v488 = vld [vmem:[%s249 + $0x3] sm:$0x1]
        %s489 = sld [smem:[#allocation7 + $0x180]]
        %v490 = vstv %s489
        %v491 = vmul.f32 %v490, %v488
        %v492 = vadd.f32 %v491, 0.0
        %v493 = vld [vmem:[%s298 + $0x3] sm:$0x1]
        %s494 = sld [smem:[#allocation7 + $0x181]]
        %v495 = vstv %s494
        %v496 = vmul.f32 %v495, %v493
        %v497 = vadd.f32 %v492, %v496
        %s498 = sld [smem:[#allocation7 + $0x182]]
        %v499 = vstv %s498
        %v500 = vmul.f32 %v499, %v488
        %502 = vrot.lane.b32.xlu0 %v500, 127
        %v503 = vpop.permute.xlu0 %502
        %v505 = vadd.f32 %v497, %v503
        %v506 = vld [vmem:[%s312 + $0x3] sm:$0x1]
        %s507 = sld [smem:[#allocation7 + $0x183]]
        %v508 = vstv %s507
        %v509 = vmul.f32 %v508, %v506
        %v510 = vadd.f32 %v505, %v509
        %v511 = vld [vmem:[%s318 + $0x3] sm:$0x1]
        %s512 = sld [smem:[#allocation7 + $0x184]]
        %v513 = vstv %s512
        %v514 = vmul.f32 %v513, %v511
        %v515 = vadd.f32 %v510, %v514
        %s516 = sld [smem:[#allocation7 + $0x185]]
        %v517 = vstv %s516
        %v518 = vmul.f32 %v517, %v506
        %520 = vrot.lane.b32.xlu0 %v518, 127
        %v521 = vpop.permute.xlu0 %520
        %v523 = vadd.f32 %v515, %v521
        %s524 = sld [smem:[#allocation7 + $0x186]]
        %v525 = vstv %s524
        %v526 = vmul.f32 %v525, %v488
        %528 = vrot.lane.b32.xlu0 %v526, 119
        %v529 = vpop.permute.xlu0 %528
        %v531 = vadd.f32 %v523, %v529
        %s532 = sld [smem:[#allocation7 + $0x187]]
        %v533 = vstv %s532
        %v534 = vmul.f32 %v533, %v493
        %536 = vrot.lane.b32.xlu0 %v534, 119
        %v537 = vpop.permute.xlu0 %536
        %v539 = vadd.f32 %v531, %v537
        %s540 = sld [smem:[#allocation7 + $0x188]]
        %v541 = vstv %s540
        %v542 = vmul.f32 %v541, %v488
        %544 = vrot.lane.b32.xlu0 %v542, 118
        %v545 = vpop.permute.xlu0 %544
        %v547 = vadd.f32 %v539, %v545
        %s548 = sld [smem:[#allocation8 + $0x3]]
        %v549 = vstv %s548
        %v550 = vadd.f32 %v547, %v549
        %v551 = vmax.f32 %v550, 0.0
        %s552 = sld [smem:[#allocation9]]
        %v553 = vstv %s552
        %v554 = vmul.f32 %v553, %v359
        %v555 = vadd.f32 %v554, 0.0
        %s556 = sld [smem:[#allocation9 + $0x80]]
        %v557 = vstv %s556
        %v558 = vmul.f32 %v557, %v423
        %v559 = vadd.f32 %v555, %v558
        %s560 = sld [smem:[#allocation9 + $0x100]]
        %v561 = vstv %s560
        %v562 = vmul.f32 %v561, %v487
        %v563 = vadd.f32 %v559, %v562
        %s564 = sld [smem:[#allocation9 + $0x180]]
        %v565 = vstv %s564
        %v566 = vmul.f32 %v565, %v551
        %v567 = vadd.f32 %v563, %v566
        %s568 = sld [smem:[#allocation11]]
        %v569 = vstv %s568
        %v570 = vadd.f32 %v567, %v569
        %v571 = vmax.f32 %v570, 0.0
        %s572 = sld [smem:[#allocation9 + $0x1]]
        %v573 = vstv %s572
        %v574 = vmul.f32 %v573, %v359
        %v575 = vadd.f32 %v574, 0.0
        %s576 = sld [smem:[#allocation9 + $0x81]]
        %v577 = vstv %s576
        %v578 = vmul.f32 %v577, %v423
        %v579 = vadd.f32 %v575, %v578
        %s580 = sld [smem:[#allocation9 + $0x101]]
        %v581 = vstv %s580
        %v582 = vmul.f32 %v581, %v487
        %v583 = vadd.f32 %v579, %v582
        %s584 = sld [smem:[#allocation9 + $0x181]]
        %v585 = vstv %s584
        %v586 = vmul.f32 %v585, %v551
        %v587 = vadd.f32 %v583, %v586
        %s588 = sld [smem:[#allocation11 + $0x1]]
        %v589 = vstv %s588
        %v590 = vadd.f32 %v587, %v589
        %v591 = vmax.f32 %v590, 0.0
        %s592 = sld [smem:[#allocation9 + $0x2]]
        %v593 = vstv %s592
        %v594 = vmul.f32 %v593, %v359
        %v595 = vadd.f32 %v594, 0.0
        %s596 = sld [smem:[#allocation9 + $0x82]]
        %v597 = vstv %s596
        %v598 = vmul.f32 %v597, %v423
        %v599 = vadd.f32 %v595, %v598
        %s600 = sld [smem:[#allocation9 + $0x102]]
        %v601 = vstv %s600
        %v602 = vmul.f32 %v601, %v487
        %v603 = vadd.f32 %v599, %v602
        %s604 = sld [smem:[#allocation9 + $0x182]]
        %v605 = vstv %s604
        %v606 = vmul.f32 %v605, %v551
        %v607 = vadd.f32 %v603, %v606
        %s608 = sld [smem:[#allocation11 + $0x2]]
        %v609 = vstv %s608
        %v610 = vadd.f32 %v607, %v609
        %v611 = vmax.f32 %v610, 0.0
        %s612 = sld [smem:[#allocation9 + $0x3]]
        %v613 = vstv %s612
        %v614 = vmul.f32 %v613, %v359
        %v615 = vadd.f32 %v614, 0.0
        %s616 = sld [smem:[#allocation9 + $0x83]]
        %v617 = vstv %s616
        %v618 = vmul.f32 %v617, %v423
        %v619 = vadd.f32 %v615, %v618
        %s620 = sld [smem:[#allocation9 + $0x103]]
        %v621 = vstv %s620
        %v622 = vmul.f32 %v621, %v487
        %v623 = vadd.f32 %v619, %v622
        %s624 = sld [smem:[#allocation9 + $0x183]]
        %v625 = vstv %s624
        %v626 = vmul.f32 %v625, %v551
        %v627 = vadd.f32 %v623, %v626
        %s628 = sld [smem:[#allocation11 + $0x3]]
        %v629 = vstv %s628
        %v630 = vadd.f32 %v627, %v629
        %v631 = vmax.f32 %v630, 0.0
        %s632 = sld [smem:[#allocation9 + $0x4]]
        %v633 = vstv %s632
        %v634 = vmul.f32 %v633, %v359
        %v635 = vadd.f32 %v634, 0.0
        %s636 = sld [smem:[#allocation9 + $0x84]]
        %v637 = vstv %s636
        %v638 = vmul.f32 %v637, %v423
        %v639 = vadd.f32 %v635, %v638
        %s640 = sld [smem:[#allocation9 + $0x104]]
        %v641 = vstv %s640
        %v642 = vmul.f32 %v641, %v487
        %v643 = vadd.f32 %v639, %v642
        %s644 = sld [smem:[#allocation9 + $0x184]]
        %v645 = vstv %s644
        %v646 = vmul.f32 %v645, %v551
        %v647 = vadd.f32 %v643, %v646
        %s648 = sld [smem:[#allocation11 + $0x4]]
        %v649 = vstv %s648
        %v650 = vadd.f32 %v647, %v649
        %v651 = vmax.f32 %v650, 0.0
        %s652 = sld [smem:[#allocation9 + $0x5]]
        %v653 = vstv %s652
        %v654 = vmul.f32 %v653, %v359
        %v655 = vadd.f32 %v654, 0.0
        %s656 = sld [smem:[#allocation9 + $0x85]]
        %v657 = vstv %s656
        %v658 = vmul.f32 %v657, %v423
        %v659 = vadd.f32 %v655, %v658
        %s660 = sld [smem:[#allocation9 + $0x105]]
        %v661 = vstv %s660
        %v662 = vmul.f32 %v661, %v487
        %v663 = vadd.f32 %v659, %v662
        %s664 = sld [smem:[#allocation9 + $0x185]]
        %v665 = vstv %s664
        %v666 = vmul.f32 %v665, %v551
        %v667 = vadd.f32 %v663, %v666
        %s668 = sld [smem:[#allocation11 + $0x5]]
        %v669 = vstv %s668
        %v670 = vadd.f32 %v667, %v669
        %v671 = vmax.f32 %v670, 0.0
        %s672 = sld [smem:[#allocation9 + $0x6]]
        %v673 = vstv %s672
        %v674 = vmul.f32 %v673, %v359
        %v675 = vadd.f32 %v674, 0.0
        %s676 = sld [smem:[#allocation9 + $0x86]]
        %v677 = vstv %s676
        %v678 = vmul.f32 %v677, %v423
        %v679 = vadd.f32 %v675, %v678
        %s680 = sld [smem:[#allocation9 + $0x106]]
        %v681 = vstv %s680
        %v682 = vmul.f32 %v681, %v487
        %v683 = vadd.f32 %v679, %v682
        %s684 = sld [smem:[#allocation9 + $0x186]]
        %v685 = vstv %s684
        %v686 = vmul.f32 %v685, %v551
        %v687 = vadd.f32 %v683, %v686
        %s688 = sld [smem:[#allocation11 + $0x6]]
        %v689 = vstv %s688
        %v690 = vadd.f32 %v687, %v689
        %v691 = vmax.f32 %v690, 0.0
        %s692 = sld [smem:[#allocation9 + $0x7]]
        %v693 = vstv %s692
        %v694 = vmul.f32 %v693, %v359
        %v695 = vadd.f32 %v694, 0.0
        %s696 = sld [smem:[#allocation9 + $0x87]]
        %v697 = vstv %s696
        %v698 = vmul.f32 %v697, %v423
        %v699 = vadd.f32 %v695, %v698
        %s700 = sld [smem:[#allocation9 + $0x107]]
        %v701 = vstv %s700
        %v702 = vmul.f32 %v701, %v487
        %v703 = vadd.f32 %v699, %v702
        %s704 = sld [smem:[#allocation9 + $0x187]]
        %v705 = vstv %s704
        %v706 = vmul.f32 %v705, %v551
        %v707 = vadd.f32 %v703, %v706
        %s708 = sld [smem:[#allocation11 + $0x7]]
        %v709 = vstv %s708
        %v710 = vadd.f32 %v707, %v709
        %v711 = vmax.f32 %v710, 0.0
        %v713 = vrot.slane %v591, 7
        %v716 = vrot.slane %v611, 6
        %v719 = vrot.slane %v631, 5
        %v722 = vrot.slane %v651, 4
        %v725 = vrot.slane %v671, 3
        %v728 = vrot.slane %v691, 2
        %v731 = vrot.slane %v711, 1
        %vm733 = vcmask 1040384
        %v734 = vsel %vm733, %v571, %v713
        %vm735 = vcmask 1041408
        %v736 = vsel %vm735, %v734, %v716
        %vm737 = vcmask 1042432
        %v738 = vsel %vm737, %v736, %v719
        %vm739 = vcmask 1043456
        %v740 = vsel %vm739, %v738, %v722
        %vm741 = vcmask 1044480
        %v742 = vsel %vm741, %v740, %v725
        %vm743 = vcmask 1045504
        %v744 = vsel %vm743, %v742, %v728
        %vm745 = vcmask 1046528
        %v746 = vsel %vm745, %v744, %v731
        %vm747 = vcmask 588800
        %748 = vst.msk [vmem:[%s292] sm:$0xff] %vm747, %v746
        %s749 = sand.u32 %s143, 1
        %s750 = scalar_lea.sflag [#allocation4], %s749
        %s751 = sand.u32 %s143, 1
        %s752 = smul.addr %s751, 8
        %s753 = scalar_lea.vmem [#allocation12], %s752
        // Predicated region
        $region61: #{tpu_custom_call.1} parent=39 // pred_check
          %p754 = pneg %p153
        $region62: #{tpu_custom_call.1} parent=39 // pred_check_branch
          %756 = sbr.rel (%p754) target = $region64
        $region63: #{tpu_custom_call.1} parent=39 // pred_region
          %s758 = ssub.s32 128, 128
          %759 = vsyncadd %s750, %s758
          %s760 = smul.addr %s25, 128
          %s761 = scalar_lea.hbm %s5, %s760
          %s763 = sshll.u32 %s753, 4
          %s764 = int_to_ptr.vmem [resolvable:$true] %s763
          %766 = dma.vmem_to_hbm [thread:$0]  %s764, 128, %s761, %s750
        $region64: #{tpu_custom_call.1} parent=39 // pred_fallthru
          _
      $region40: #{tpu_custom_call.1} parent=5 // pred_fallthru
        _
      %p767 = scmp.le.s32.totalorder 2, %s20
      // Predicated region
      $region65: #{tpu_custom_call.1} parent=5 // pred_check
        %p768 = pneg %p767
      $region66: #{tpu_custom_call.1} parent=5 // pred_check_branch
        %770 = sbr.rel (%p768) target = $region68
      $region67: #{tpu_custom_call.1} parent=5 // pred_region
        %s771 = ssub.s32 %s20, 2
        // Predicated region
        $region69: #{tpu_custom_call.1} parent=67 // pred_check
          %p772 = pneg %p159
        $region70: #{tpu_custom_call.1} parent=67 // pred_check_branch
          %774 = sbr.rel (%p772) target = $region72
        $region71: #{tpu_custom_call.1} parent=67 // pred_region
          %s775 = sand.u32 %s144, 1
          %s776 = scalar_lea.sflag [#allocation4], %s775
          %s777 = sand.u32 %s144, 1
          %s778 = smul.addr %s777, 8
          %s779 = scalar_lea.vmem [#allocation12], %s778
          %780 = dma.done %s776, 128
        $region72: #{tpu_custom_call.1} parent=67 // pred_fallthru
          _
      $region68: #{tpu_custom_call.1} parent=5 // pred_fallthru
        _
    $region6: #{tpu_custom_call.1} parent=1 // loop_footer
      %s24 = sadd.s32 1, %s20
    $region7: #{tpu_custom_call.1} parent=1 // loop_footer_branch
      %19 = sbr.rel target = $region3
    $region8: #{tpu_custom_call.1} parent=1 // loop_exit
      _
    %781 = vsyncpa [#allocation3], 1
    %s782 = scalar_lea.sflag [#allocation3], 1
    %783 = vsyncpa %s782, 1
    %784 = vsyncpa [#allocation4], 1
    %s785 = scalar_lea.sflag [#allocation4], 1
    %786 = vsyncpa %s785, 1
    %787 = vsyncpa [#allocation5], 1
    %s788 = scalar_lea.sflag [#allocation5], 1
    %789 = vsyncpa %s788, 1
    %790 = vsyncpa [#allocation6], 1
    %s791 = scalar_lea.sflag [#allocation6], 1
    %792 = vsyncpa %s791, 1
    %793 = vsyncpa [#allocation10], 1

</llo_original>
